<compile_context>
chip_gen: v5e
topology: v5e:2x2
jax: 0.10.0
libtpu: 0.0.40
codegen_flags: <defaults>
</compile_context>

<pallas_src>
import functools

import jax
import jax.numpy as jnp
from jax.experimental import pallas as pl
from jax.experimental.pallas import tpu as pltpu


# ----------------------------------------------------------------------------
# Trace-time helper for align_corners=True bilinear weights
# ----------------------------------------------------------------------------
def bilinear_matrix(n_in, n_out, dtype=jnp.float32):
    """(n_out, n_in) interpolation matrix, align_corners=True (UpsamplingBilinear2d)."""
    if n_in == 1:
        return jnp.ones((n_out, 1), dtype)
    src = jnp.arange(n_out, dtype=jnp.float32) * (n_in - 1) / (n_out - 1)
    lo = jnp.clip(jnp.floor(src).astype(jnp.int32), 0, n_in - 2)
    frac = src - lo.astype(jnp.float32)
    rows = jnp.arange(n_out)
    m = jnp.zeros((n_out, n_in), jnp.float32)
    m = m.at[rows, lo].add(1.0 - frac)
    m = m.at[rows, lo + 1].add(frac)
    return m.astype(dtype)


# ----------------------------------------------------------------------------
# Fused kernel: upsample(x2) -> pad+concat -> conv1 -> conv2
# ----------------------------------------------------------------------------
def _upadd_kernel(h, w, c1, c2, cout,
                  x1_ref, x2_ref, e_ref, et_ref, ue_ref, mask_ref,
                  w1_ref, b1_ref, w2_ref, b2_ref,
                  o_ref,
                  pad1_ref, pad2_ref):
    # x1_ref : (1, C1, H*W)        skip connection, channels-first, lane-dense
    # x2_ref : (1, C2, Hin*Win)    deep features
    # e_ref  : (H*W, Np)           embed compact image into zero-padded grid
    # et_ref : (Np, H*W)           crop padded grid back to compact image
    # ue_ref : (Hin*Win, Np)       bilinear-upsample-then-embed matrix (U @ E)
    # mask_ref: (1, Np)            1.0 on padded-grid interior, 0.0 on the ring
    # w1_ref : (Cout, 9*(C1+C2))   tap-major (ky, kx, ci) conv1 weights
    # w2_ref : (Cout, 9*Cout)      conv2 weights
    # b*_ref : (Cout, 1)
    # o_ref  : (1, Cout, H*W)      lane-dense output tile
    # pad*_ref: (C, Np + 2*margin) flat padded buffers (+ margins for slices)
    ctot = c1 + c2
    wp = w + 2                       # padded row stride
    npad = (h + 2) * wp              # flat padded-image size
    marg = w + 3                     # slice margin on each side of the content

    # --- zero only the tiny slice margins (content is fully rewritten) -------
    pad1_ref[:, 0:marg] = jnp.zeros((ctot, marg), jnp.float32)
    pad1_ref[:, marg + npad:marg + npad + marg] = jnp.zeros((ctot, marg), jnp.float32)
    pad2_ref[:, 0:marg] = jnp.zeros((cout, marg), jnp.float32)
    pad2_ref[:, marg + npad:marg + npad + marg] = jnp.zeros((cout, marg), jnp.float32)

    # --- upsample + zero-pad + implicit concat, all as lane-dense MXU matmuls -
    pad1_ref[0:c1, marg:marg + npad] = jnp.dot(
        x1_ref[0], e_ref[...], preferred_element_type=jnp.float32)
    pad1_ref[c1:ctot, marg:marg + npad] = jnp.dot(
        x2_ref[0], ue_ref[...], preferred_element_type=jnp.float32)

    # --- conv1: 9 shifted matmuls accumulated in f32 (padded coordinates) ----
    y1 = jnp.zeros((cout, npad), jnp.float32)
    for ky in range(3):
        for kx in range(3):
            t = ky * 3 + kx
            s = ky * wp + kx                          # static lane-slice start
            y1 = y1 + jnp.dot(w1_ref[:, t * ctot:(t + 1) * ctot],
                              pad1_ref[:, s:s + npad],
                              preferred_element_type=jnp.float32)
    # bias, then zero the padding ring so it is valid padding for conv2
    y1 = (y1 + b1_ref[...]) * mask_ref[...]
    pad2_ref[:, marg:marg + npad] = y1                # stays in VMEM for conv2

    # --- conv2: 9 shifted matmuls, then crop back to compact (Cout, H*W) -----
    y2 = jnp.zeros((cout, npad), jnp.float32)
    for ky in range(3):
        for kx in range(3):
            t = ky * 3 + kx
            s = ky * wp + kx
            y2 = y2 + jnp.dot(w2_ref[:, t * cout:(t + 1) * cout],
                              pad2_ref[:, s:s + npad],
                              preferred_element_type=jnp.float32)
    y2 = jnp.dot(y2, et_ref[...], preferred_element_type=jnp.float32) + b2_ref[...]
    o_ref[0] = y2.astype(o_ref.dtype)                 # lane-dense writeback


# ----------------------------------------------------------------------------
# Wrapper (NCHW in, NCHW out; no transposes, only free reshapes)
# ----------------------------------------------------------------------------
def upadd_pallas(x1_nchw, x2_nchw, w1_oihw, b1, w2_oihw, b2):
    n, c1, h, w = x1_nchw.shape
    _, c2, hin, win = x2_nchw.shape
    assert h == 2 * hin and w == 2 * win, "upsample factor must be 2"
    cout = w1_oihw.shape[0]
    ctot = c1 + c2
    assert w1_oihw.shape == (cout, ctot, 3, 3)
    assert w2_oihw.shape == (cout, cout, 3, 3)

    f32 = jnp.float32
    hw = h * w
    wp = w + 2
    npad = (h + 2) * wp
    marg = w + 3
    buf = npad + 2 * marg

    # bilinear align_corners=True upsample as a single constant matrix
    mh = bilinear_matrix(hin, h)                      # (H, Hin)
    mw = bilinear_matrix(win, w)                      # (W, Win)
    u = jnp.kron(mh.T, mw.T)                          # (Hin*Win, H*W)

    # E embeds a compact (row-major, stride W) image into the zero-padded flat
    # grid (stride W+2); E^T crops it back; UE = upsample-then-embed.
    p = jnp.arange(hw)
    q = (p // w + 1) * wp + (p % w + 1)
    e = jnp.zeros((hw, npad), f32).at[p, q].set(1.0)  # (H*W, Np)
    et = e.T                                          # (Np, H*W)
    ue = u @ e                                        # (Hin*Win, Np)
    mask = e.sum(axis=0, keepdims=True)               # (1, Np)

    x1f = x1_nchw.reshape(n, c1, hw)                  # free, contiguous reshapes
    x2f = x2_nchw.reshape(n, c2, hin * win)
    # conv weights (Cout, tap-major 9*Cin): OIHW -> (O, ky, kx, I) -> flatten
    w1m = jnp.transpose(w1_oihw, (0, 2, 3, 1)).reshape(cout, 9 * ctot)
    w2m = jnp.transpose(w2_oihw, (0, 2, 3, 1)).reshape(cout, 9 * cout)
    b1m = b1.reshape(cout, 1).astype(f32)
    b2m = b2.reshape(cout, 1).astype(f32)

    kernel = functools.partial(_upadd_kernel, h, w, c1, c2, cout)

    out = pl.pallas_call(
        kernel,
        out_shape=jax.ShapeDtypeStruct((n, cout, hw), x1_nchw.dtype),
        grid=(n,),
        in_specs=[
            pl.BlockSpec((1, c1, hw), lambda b: (b, 0, 0)),          # x1
            pl.BlockSpec((1, c2, hin * win), lambda b: (b, 0, 0)),   # x2
            pl.BlockSpec((hw, npad), lambda b: (0, 0)),              # E
            pl.BlockSpec((npad, hw), lambda b: (0, 0)),              # E^T
            pl.BlockSpec((hin * win, npad), lambda b: (0, 0)),       # U@E
            pl.BlockSpec((1, npad), lambda b: (0, 0)),               # interior mask
            pl.BlockSpec((cout, 9 * ctot), lambda b: (0, 0)),        # w1
            pl.BlockSpec((cout, 1), lambda b: (0, 0)),               # b1
            pl.BlockSpec((cout, 9 * cout), lambda b: (0, 0)),        # w2
            pl.BlockSpec((cout, 1), lambda b: (0, 0)),               # b2
        ],
        out_specs=pl.BlockSpec((1, cout, hw), lambda b: (b, 0, 0)),  # lane-dense
        scratch_shapes=[
            pltpu.VMEM((ctot, buf), f32),   # padded concat([x1, up]) + margins
            pltpu.VMEM((cout, buf), f32),   # padded conv1 output + margins
        ],
        compiler_params=pltpu.CompilerParams(dimension_semantics=("parallel",)),
    )(x1f, x2f, e, et, ue, mask, w1m, b1m, w2m, b2m)

    return out.reshape(n, cout, h, w)                 # free reshape to NCHW


@jax.jit
def upadd_forward(inputs1_nchw, inputs2_nchw, w1, b1, w2, b2):
    """Upadd.forward.  inputs1: (N,C1,H,W), inputs2: (N,C2,H/2,W/2) -> (N,Cout,H,W)."""
    return upadd_pallas(inputs1_nchw, inputs2_nchw, w1, b1, w2, b2)


# ----------------------------------------------------------------------------
# Pure-JAX reference (correctness check only)
# ----------------------------------------------------------------------------
def ref_forward(inputs1_nchw, inputs2_nchw, w1_oihw, b1, w2_oihw, b2):
    _, _, hin, win = inputs2_nchw.shape
    mh = bilinear_matrix(hin, 2 * hin)
    mw = bilinear_matrix(win, 2 * win)
    up = jnp.einsum("Hh,nchw,Ww->ncHW", mh, inputs2_nchw, mw)
    cat = jnp.concatenate([inputs1_nchw, up], axis=1)

    def conv(x, w_oihw, b):
        y = jax.lax.conv_general_dilated(
            x, w_oihw, window_strides=(1, 1), padding=((1, 1), (1, 1)),
            dimension_numbers=("NCHW", "OIHW", "NCHW"))
        return y + b[None, :, None, None]

    return conv(conv(cat, w1_oihw, b1), w2_oihw, b2)


# ----------------------------------------------------------------------------
if __name__ == "__main__":
    # inputs1 is the skip connection (N, C1, H, W); inputs2 the deeper map
    # (N, C2, H/2, W/2); in_size = C1 + C2.
    N, C1, C2, H, W = 2, 4, 4, 16, 16
    in_size, out_size = C1 + C2, 8

    key = jax.random.PRNGKey(0)
    k1, k2, k3, k4, k5, k6 = jax.random.split(key, 6)
    inputs1 = jax.random.normal(k1, (N, C1, H, W), jnp.float32)
    inputs2 = jax.random.normal(k2, (N, C2, H // 2, W // 2), jnp.float32)

    # Deterministic parameter init (PyTorch-native OIHW layout).
    s1 = 1.0 / jnp.sqrt(in_size * 9.0)
    s2 = 1.0 / jnp.sqrt(out_size * 9.0)
    w1 = jax.random.uniform(k3, (out_size, in_size, 3, 3), jnp.float32, -s1, s1)
    b1 = jax.random.uniform(k4, (out_size,), jnp.float32, -s1, s1)
    w2 = jax.random.uniform(k5, (out_size, out_size, 3, 3), jnp.float32, -s2, s2)
    b2 = jax.random.uniform(k6, (out_size,), jnp.float32, -s2, s2)

    out = jax.block_until_ready(upadd_forward(inputs1, inputs2, w1, b1, w2, b2))
    assert out.shape == (N, out_size, H, W), out.shape

    ref = jax.block_until_ready(ref_forward(inputs1, inputs2, w1, b1, w2, b2))
    if not jnp.allclose(out, ref, atol=1e-3, rtol=1e-3):
        raise AssertionError("Pallas Upadd does not match reference")

    print("KERNEL_OK")
</pallas_src>

<mosaic_0001>
module attributes {stable_mosaic.version = 11 : i64} {
  func.func @_upadd_kernel(%arg0: i32, %arg1: memref<1x4x256xf32, #tpu.memory_space<vmem>>, %arg2: memref<1x4x64xf32, #tpu.memory_space<vmem>>, %arg3: memref<256x324xf32, #tpu.memory_space<vmem>>, %arg4: memref<324x256xf32, #tpu.memory_space<vmem>>, %arg5: memref<64x324xf32, #tpu.memory_space<vmem>>, %arg6: memref<1x324xf32, #tpu.memory_space<vmem>>, %arg7: memref<8x72xf32, #tpu.memory_space<vmem>>, %arg8: memref<8x1xf32, #tpu.memory_space<vmem>>, %arg9: memref<8x72xf32, #tpu.memory_space<vmem>>, %arg10: memref<8x1xf32, #tpu.memory_space<vmem>>, %arg11: memref<1x8x256xf32, #tpu.memory_space<vmem>>, %arg12: memref<8x362xf32, #tpu.memory_space<vmem>>, %arg13: memref<8x362xf32, #tpu.memory_space<vmem>>) attributes {dimension_semantics = [#tpu.dimension_semantics<parallel>], iteration_bounds = array<i64: 2>, scalar_prefetch = 0 : i64, scratch_operands = 2 : i64, tpu.core_type = #tpu.core_type<tc>, window_params = [{transform_indices = @transform_0, window_bounds = array<i64: 1, 4, 256>}, {transform_indices = @transform_1, window_bounds = array<i64: 1, 4, 64>}, {pipeline_mode = #tpu.pipeline_mode<synchronous>, transform_indices = @transform_2, window_bounds = array<i64: 256, 324>}, {pipeline_mode = #tpu.pipeline_mode<synchronous>, transform_indices = @transform_3, window_bounds = array<i64: 324, 256>}, {pipeline_mode = #tpu.pipeline_mode<synchronous>, transform_indices = @transform_4, window_bounds = array<i64: 64, 324>}, {pipeline_mode = #tpu.pipeline_mode<synchronous>, transform_indices = @transform_5, window_bounds = array<i64: 1, 324>}, {pipeline_mode = #tpu.pipeline_mode<synchronous>, transform_indices = @transform_6, window_bounds = array<i64: 8, 72>}, {pipeline_mode = #tpu.pipeline_mode<synchronous>, transform_indices = @transform_7, window_bounds = array<i64: 8, 1>}, {pipeline_mode = #tpu.pipeline_mode<synchronous>, transform_indices = @transform_8, window_bounds = array<i64: 8, 72>}, {pipeline_mode = #tpu.pipeline_mode<synchronous>, transform_indices = @transform_9, window_bounds = array<i64: 8, 1>}, {transform_indices = @transform_10, window_bounds = array<i64: 1, 8, 256>}]} {
    %cst = arith.constant 0.000000e+00 : f32
    %0 = vector.broadcast %cst : f32 to vector<8x19xf32>
    %c0 = arith.constant 0 : index
    %c0_0 = arith.constant 0 : index
    %1 = vector.load %arg12[%c0, %c0_0] : memref<8x362xf32, #tpu.memory_space<vmem>>, vector<8x19xf32>
    tpu.vector_store %arg12[%c0, %c0_0], %0 {strides = array<i32>} : memref<8x362xf32, #tpu.memory_space<vmem>>, vector<8x19xf32>,
    %cst_1 = arith.constant 0.000000e+00 : f32
    %2 = vector.broadcast %cst_1 : f32 to vector<8x19xf32>
    %c0_2 = arith.constant 0 : index
    %c343 = arith.constant 343 : index
    %3 = vector.load %arg12[%c0_2, %c343] : memref<8x362xf32, #tpu.memory_space<vmem>>, vector<8x19xf32>
    tpu.vector_store %arg12[%c0_2, %c343], %2 {strides = array<i32>} : memref<8x362xf32, #tpu.memory_space<vmem>>, vector<8x19xf32>,
    %cst_3 = arith.constant 0.000000e+00 : f32
    %4 = vector.broadcast %cst_3 : f32 to vector<8x19xf32>
    %c0_4 = arith.constant 0 : index
    %c0_5 = arith.constant 0 : index
    %5 = vector.load %arg13[%c0_4, %c0_5] : memref<8x362xf32, #tpu.memory_space<vmem>>, vector<8x19xf32>
    tpu.vector_store %arg13[%c0_4, %c0_5], %4 {strides = array<i32>} : memref<8x362xf32, #tpu.memory_space<vmem>>, vector<8x19xf32>,
    %cst_6 = arith.constant 0.000000e+00 : f32
    %6 = vector.broadcast %cst_6 : f32 to vector<8x19xf32>
    %c0_7 = arith.constant 0 : index
    %c343_8 = arith.constant 343 : index
    %7 = vector.load %arg13[%c0_7, %c343_8] : memref<8x362xf32, #tpu.memory_space<vmem>>, vector<8x19xf32>
    tpu.vector_store %arg13[%c0_7, %c343_8], %6 {strides = array<i32>} : memref<8x362xf32, #tpu.memory_space<vmem>>, vector<8x19xf32>,
    %c0_9 = arith.constant 0 : index
    %c0_10 = arith.constant 0 : index
    %c0_11 = arith.constant 0 : index
    %8 = vector.load %arg1[%c0_9, %c0_10, %c0_11] : memref<1x4x256xf32, #tpu.memory_space<vmem>>, vector<1x4x256xf32>
    %9 = vector.shape_cast %8 : vector<1x4x256xf32> to vector<4x256xf32>
    %c0_12 = arith.constant 0 : index
    %c0_13 = arith.constant 0 : index
    %10 = vector.load %arg3[%c0_12, %c0_13] : memref<256x324xf32, #tpu.memory_space<vmem>>, vector<256x324xf32>
    %cst_14 = arith.constant dense<0.000000e+00> : vector<4x324xf32>
    %11 = tpu.matmul %9, %10, %cst_14 {dimension_numbers = #tpu.dot_dimension_numbers<[1], [0], [0], [1], [0, 0, 1, 1], [], []>} : vector<4x256xf32>, vector<256x324xf32>, vector<4x324xf32> -> vector<4x324xf32>
    %c0_15 = arith.constant 0 : index
    %c19 = arith.constant 19 : index
    %12 = vector.load %arg12[%c0_15, %c19] : memref<8x362xf32, #tpu.memory_space<vmem>>, vector<4x324xf32>
    tpu.vector_store %arg12[%c0_15, %c19], %11 {strides = array<i32>} : memref<8x362xf32, #tpu.memory_space<vmem>>, vector<4x324xf32>,
    %c0_16 = arith.constant 0 : index
    %c0_17 = arith.constant 0 : index
    %c0_18 = arith.constant 0 : index
    %13 = vector.load %arg2[%c0_16, %c0_17, %c0_18] : memref<1x4x64xf32, #tpu.memory_space<vmem>>, vector<1x4x64xf32>
    %14 = vector.shape_cast %13 : vector<1x4x64xf32> to vector<4x64xf32>
    %c0_19 = arith.constant 0 : index
    %c0_20 = arith.constant 0 : index
    %15 = vector.load %arg5[%c0_19, %c0_20] : memref<64x324xf32, #tpu.memory_space<vmem>>, vector<64x324xf32>
    %cst_21 = arith.constant dense<0.000000e+00> : vector<4x324xf32>
    %16 = tpu.matmul %14, %15, %cst_21 {dimension_numbers = #tpu.dot_dimension_numbers<[1], [0], [0], [1], [0, 0, 1, 1], [], []>} : vector<4x64xf32>, vector<64x324xf32>, vector<4x324xf32> -> vector<4x324xf32>
    %c4 = arith.constant 4 : index
    %c19_22 = arith.constant 19 : index
    %17 = vector.load %arg12[%c4, %c19_22] : memref<8x362xf32, #tpu.memory_space<vmem>>, vector<4x324xf32>
    tpu.vector_store %arg12[%c4, %c19_22], %16 {strides = array<i32>} : memref<8x362xf32, #tpu.memory_space<vmem>>, vector<4x324xf32>,
    %cst_23 = arith.constant 0.000000e+00 : f32
    %18 = vector.broadcast %cst_23 : f32 to vector<8x324xf32>
    %c0_24 = arith.constant 0 : index
    %c0_25 = arith.constant 0 : index
    %19 = vector.load %arg7[%c0_24, %c0_25] : memref<8x72xf32, #tpu.memory_space<vmem>>, vector<8x8xf32>
    %c0_26 = arith.constant 0 : index
    %c0_27 = arith.constant 0 : index
    %20 = vector.load %arg12[%c0_26, %c0_27] : memref<8x362xf32, #tpu.memory_space<vmem>>, vector<8x324xf32>
    %cst_28 = arith.constant dense<0.000000e+00> : vector<8x324xf32>
    %21 = tpu.matmul %19, %20, %cst_28 {dimension_numbers = #tpu.dot_dimension_numbers<[1], [0], [0], [1], [0, 0, 1, 1], [], []>} : vector<8x8xf32>, vector<8x324xf32>, vector<8x324xf32> -> vector<8x324xf32>
    %22 = arith.addf %18, %21 : vector<8x324xf32>
    %c0_29 = arith.constant 0 : index
    %c8 = arith.constant 8 : index
    %23 = vector.load %arg7[%c0_29, %c8] : memref<8x72xf32, #tpu.memory_space<vmem>>, vector<8x8xf32>
    %c0_30 = arith.constant 0 : index
    %c1 = arith.constant 1 : index
    %24 = vector.load %arg12[%c0_30, %c1] : memref<8x362xf32, #tpu.memory_space<vmem>>, vector<8x324xf32>
    %cst_31 = arith.constant dense<0.000000e+00> : vector<8x324xf32>
    %25 = tpu.matmul %23, %24, %cst_31 {dimension_numbers = #tpu.dot_dimension_numbers<[1], [0], [0], [1], [0, 0, 1, 1], [], []>} : vector<8x8xf32>, vector<8x324xf32>, vector<8x324xf32> -> vector<8x324xf32>
    %26 = arith.addf %22, %25 : vector<8x324xf32>
    %c0_32 = arith.constant 0 : index
    %c16 = arith.constant 16 : index
    %27 = vector.load %arg7[%c0_32, %c16] : memref<8x72xf32, #tpu.memory_space<vmem>>, vector<8x8xf32>
    %c0_33 = arith.constant 0 : index
    %c2 = arith.constant 2 : index
    %28 = vector.load %arg12[%c0_33, %c2] : memref<8x362xf32, #tpu.memory_space<vmem>>, vector<8x324xf32>
    %cst_34 = arith.constant dense<0.000000e+00> : vector<8x324xf32>
    %29 = tpu.matmul %27, %28, %cst_34 {dimension_numbers = #tpu.dot_dimension_numbers<[1], [0], [0], [1], [0, 0, 1, 1], [], []>} : vector<8x8xf32>, vector<8x324xf32>, vector<8x324xf32> -> vector<8x324xf32>
    %30 = arith.addf %26, %29 : vector<8x324xf32>
    %c0_35 = arith.constant 0 : index
    %c24 = arith.constant 24 : index
    %31 = vector.load %arg7[%c0_35, %c24] : memref<8x72xf32, #tpu.memory_space<vmem>>, vector<8x8xf32>
    %c0_36 = arith.constant 0 : index
    %c18 = arith.constant 18 : index
    %32 = vector.load %arg12[%c0_36, %c18] : memref<8x362xf32, #tpu.memory_space<vmem>>, vector<8x324xf32>
    %cst_37 = arith.constant dense<0.000000e+00> : vector<8x324xf32>
    %33 = tpu.matmul %31, %32, %cst_37 {dimension_numbers = #tpu.dot_dimension_numbers<[1], [0], [0], [1], [0, 0, 1, 1], [], []>} : vector<8x8xf32>, vector<8x324xf32>, vector<8x324xf32> -> vector<8x324xf32>
    %34 = arith.addf %30, %33 : vector<8x324xf32>
    %c0_38 = arith.constant 0 : index
    %c32 = arith.constant 32 : index
    %35 = vector.load %arg7[%c0_38, %c32] : memref<8x72xf32, #tpu.memory_space<vmem>>, vector<8x8xf32>
    %c0_39 = arith.constant 0 : index
    %c19_40 = arith.constant 19 : index
    %36 = vector.load %arg12[%c0_39, %c19_40] : memref<8x362xf32, #tpu.memory_space<vmem>>, vector<8x324xf32>
    %cst_41 = arith.constant dense<0.000000e+00> : vector<8x324xf32>
    %37 = tpu.matmul %35, %36, %cst_41 {dimension_numbers = #tpu.dot_dimension_numbers<[1], [0], [0], [1], [0, 0, 1, 1], [], []>} : vector<8x8xf32>, vector<8x324xf32>, vector<8x324xf32> -> vector<8x324xf32>
    %38 = arith.addf %34, %37 : vector<8x324xf32>
    %c0_42 = arith.constant 0 : index
    %c40 = arith.constant 40 : index
    %39 = vector.load %arg7[%c0_42, %c40] : memref<8x72xf32, #tpu.memory_space<vmem>>, vector<8x8xf32>
    %c0_43 = arith.constant 0 : index
    %c20 = arith.constant 20 : index
    %40 = vector.load %arg12[%c0_43, %c20] : memref<8x362xf32, #tpu.memory_space<vmem>>, vector<8x324xf32>
    %cst_44 = arith.constant dense<0.000000e+00> : vector<8x324xf32>
    %41 = tpu.matmul %39, %40, %cst_44 {dimension_numbers = #tpu.dot_dimension_numbers<[1], [0], [0], [1], [0, 0, 1, 1], [], []>} : vector<8x8xf32>, vector<8x324xf32>, vector<8x324xf32> -> vector<8x324xf32>
    %42 = arith.addf %38, %41 : vector<8x324xf32>
    %c0_45 = arith.constant 0 : index
    %c48 = arith.constant 48 : index
    %43 = vector.load %arg7[%c0_45, %c48] : memref<8x72xf32, #tpu.memory_space<vmem>>, vector<8x8xf32>
    %c0_46 = arith.constant 0 : index
    %c36 = arith.constant 36 : index
    %44 = vector.load %arg12[%c0_46, %c36] : memref<8x362xf32, #tpu.memory_space<vmem>>, vector<8x324xf32>
    %cst_47 = arith.constant dense<0.000000e+00> : vector<8x324xf32>
    %45 = tpu.matmul %43, %44, %cst_47 {dimension_numbers = #tpu.dot_dimension_numbers<[1], [0], [0], [1], [0, 0, 1, 1], [], []>} : vector<8x8xf32>, vector<8x324xf32>, vector<8x324xf32> -> vector<8x324xf32>
    %46 = arith.addf %42, %45 : vector<8x324xf32>
    %c0_48 = arith.constant 0 : index
    %c56 = arith.constant 56 : index
    %47 = vector.load %arg7[%c0_48, %c56] : memref<8x72xf32, #tpu.memory_space<vmem>>, vector<8x8xf32>
    %c0_49 = arith.constant 0 : index
    %c37 = arith.constant 37 : index
    %48 = vector.load %arg12[%c0_49, %c37] : memref<8x362xf32, #tpu.memory_space<vmem>>, vector<8x324xf32>
    %cst_50 = arith.constant dense<0.000000e+00> : vector<8x324xf32>
    %49 = tpu.matmul %47, %48, %cst_50 {dimension_numbers = #tpu.dot_dimension_numbers<[1], [0], [0], [1], [0, 0, 1, 1], [], []>} : vector<8x8xf32>, vector<8x324xf32>, vector<8x324xf32> -> vector<8x324xf32>
    %50 = arith.addf %46, %49 : vector<8x324xf32>
    %c0_51 = arith.constant 0 : index
    %c64 = arith.constant 64 : index
    %51 = vector.load %arg7[%c0_51, %c64] : memref<8x72xf32, #tpu.memory_space<vmem>>, vector<8x8xf32>
    %c0_52 = arith.constant 0 : index
    %c38 = arith.constant 38 : index
    %52 = vector.load %arg12[%c0_52, %c38] : memref<8x362xf32, #tpu.memory_space<vmem>>, vector<8x324xf32>
    %cst_53 = arith.constant dense<0.000000e+00> : vector<8x324xf32>
    %53 = tpu.matmul %51, %52, %cst_53 {dimension_numbers = #tpu.dot_dimension_numbers<[1], [0], [0], [1], [0, 0, 1, 1], [], []>} : vector<8x8xf32>, vector<8x324xf32>, vector<8x324xf32> -> vector<8x324xf32>
    %54 = arith.addf %50, %53 : vector<8x324xf32>
    %c0_54 = arith.constant 0 : index
    %c0_55 = arith.constant 0 : index
    %55 = vector.load %arg8[%c0_54, %c0_55] : memref<8x1xf32, #tpu.memory_space<vmem>>, vector<8x1xf32>
    %56 = vector.broadcast %55 : vector<8x1xf32> to vector<8x324xf32>
    %57 = arith.addf %54, %56 : vector<8x324xf32>
    %c0_56 = arith.constant 0 : index
    %c0_57 = arith.constant 0 : index
    %58 = vector.load %arg6[%c0_56, %c0_57] : memref<1x324xf32, #tpu.memory_space<vmem>>, vector<1x324xf32>
    %59 = vector.broadcast %58 : vector<1x324xf32> to vector<8x324xf32>
    %60 = arith.mulf %57, %59 : vector<8x324xf32>
    %c0_58 = arith.constant 0 : index
    %c19_59 = arith.constant 19 : index
    %61 = vector.load %arg13[%c0_58, %c19_59] : memref<8x362xf32, #tpu.memory_space<vmem>>, vector<8x324xf32>
    tpu.vector_store %arg13[%c0_58, %c19_59], %60 {strides = array<i32>} : memref<8x362xf32, #tpu.memory_space<vmem>>, vector<8x324xf32>,
    %cst_60 = arith.constant 0.000000e+00 : f32
    %62 = vector.broadcast %cst_60 : f32 to vector<8x324xf32>
    %c0_61 = arith.constant 0 : index
    %c0_62 = arith.constant 0 : index
    %63 = vector.load %arg9[%c0_61, %c0_62] : memref<8x72xf32, #tpu.memory_space<vmem>>, vector<8x8xf32>
    %c0_63 = arith.constant 0 : index
    %c0_64 = arith.constant 0 : index
    %64 = vector.load %arg13[%c0_63, %c0_64] : memref<8x362xf32, #tpu.memory_space<vmem>>, vector<8x324xf32>
    %cst_65 = arith.constant dense<0.000000e+00> : vector<8x324xf32>
    %65 = tpu.matmul %63, %64, %cst_65 {dimension_numbers = #tpu.dot_dimension_numbers<[1], [0], [0], [1], [0, 0, 1, 1], [], []>} : vector<8x8xf32>, vector<8x324xf32>, vector<8x324xf32> -> vector<8x324xf32>
    %66 = arith.addf %62, %65 : vector<8x324xf32>
    %c0_66 = arith.constant 0 : index
    %c8_67 = arith.constant 8 : index
    %67 = vector.load %arg9[%c0_66, %c8_67] : memref<8x72xf32, #tpu.memory_space<vmem>>, vector<8x8xf32>
    %c0_68 = arith.constant 0 : index
    %c1_69 = arith.constant 1 : index
    %68 = vector.load %arg13[%c0_68, %c1_69] : memref<8x362xf32, #tpu.memory_space<vmem>>, vector<8x324xf32>
    %cst_70 = arith.constant dense<0.000000e+00> : vector<8x324xf32>
    %69 = tpu.matmul %67, %68, %cst_70 {dimension_numbers = #tpu.dot_dimension_numbers<[1], [0], [0], [1], [0, 0, 1, 1], [], []>} : vector<8x8xf32>, vector<8x324xf32>, vector<8x324xf32> -> vector<8x324xf32>
    %70 = arith.addf %66, %69 : vector<8x324xf32>
    %c0_71 = arith.constant 0 : index
    %c16_72 = arith.constant 16 : index
    %71 = vector.load %arg9[%c0_71, %c16_72] : memref<8x72xf32, #tpu.memory_space<vmem>>, vector<8x8xf32>
    %c0_73 = arith.constant 0 : index
    %c2_74 = arith.constant 2 : index
    %72 = vector.load %arg13[%c0_73, %c2_74] : memref<8x362xf32, #tpu.memory_space<vmem>>, vector<8x324xf32>
    %cst_75 = arith.constant dense<0.000000e+00> : vector<8x324xf32>
    %73 = tpu.matmul %71, %72, %cst_75 {dimension_numbers = #tpu.dot_dimension_numbers<[1], [0], [0], [1], [0, 0, 1, 1], [], []>} : vector<8x8xf32>, vector<8x324xf32>, vector<8x324xf32> -> vector<8x324xf32>
    %74 = arith.addf %70, %73 : vector<8x324xf32>
    %c0_76 = arith.constant 0 : index
    %c24_77 = arith.constant 24 : index
    %75 = vector.load %arg9[%c0_76, %c24_77] : memref<8x72xf32, #tpu.memory_space<vmem>>, vector<8x8xf32>
    %c0_78 = arith.constant 0 : index
    %c18_79 = arith.constant 18 : index
    %76 = vector.load %arg13[%c0_78, %c18_79] : memref<8x362xf32, #tpu.memory_space<vmem>>, vector<8x324xf32>
    %cst_80 = arith.constant dense<0.000000e+00> : vector<8x324xf32>
    %77 = tpu.matmul %75, %76, %cst_80 {dimension_numbers = #tpu.dot_dimension_numbers<[1], [0], [0], [1], [0, 0, 1, 1], [], []>} : vector<8x8xf32>, vector<8x324xf32>, vector<8x324xf32> -> vector<8x324xf32>
    %78 = arith.addf %74, %77 : vector<8x324xf32>
    %c0_81 = arith.constant 0 : index
    %c32_82 = arith.constant 32 : index
    %79 = vector.load %arg9[%c0_81, %c32_82] : memref<8x72xf32, #tpu.memory_space<vmem>>, vector<8x8xf32>
    %c0_83 = arith.constant 0 : index
    %c19_84 = arith.constant 19 : index
    %80 = vector.load %arg13[%c0_83, %c19_84] : memref<8x362xf32, #tpu.memory_space<vmem>>, vector<8x324xf32>
    %cst_85 = arith.constant dense<0.000000e+00> : vector<8x324xf32>
    %81 = tpu.matmul %79, %80, %cst_85 {dimension_numbers = #tpu.dot_dimension_numbers<[1], [0], [0], [1], [0, 0, 1, 1], [], []>} : vector<8x8xf32>, vector<8x324xf32>, vector<8x324xf32> -> vector<8x324xf32>
    %82 = arith.addf %78, %81 : vector<8x324xf32>
    %c0_86 = arith.constant 0 : index
    %c40_87 = arith.constant 40 : index
    %83 = vector.load %arg9[%c0_86, %c40_87] : memref<8x72xf32, #tpu.memory_space<vmem>>, vector<8x8xf32>
    %c0_88 = arith.constant 0 : index
    %c20_89 = arith.constant 20 : index
    %84 = vector.load %arg13[%c0_88, %c20_89] : memref<8x362xf32, #tpu.memory_space<vmem>>, vector<8x324xf32>
    %cst_90 = arith.constant dense<0.000000e+00> : vector<8x324xf32>
    %85 = tpu.matmul %83, %84, %cst_90 {dimension_numbers = #tpu.dot_dimension_numbers<[1], [0], [0], [1], [0, 0, 1, 1], [], []>} : vector<8x8xf32>, vector<8x324xf32>, vector<8x324xf32> -> vector<8x324xf32>
    %86 = arith.addf %82, %85 : vector<8x324xf32>
    %c0_91 = arith.constant 0 : index
    %c48_92 = arith.constant 48 : index
    %87 = vector.load %arg9[%c0_91, %c48_92] : memref<8x72xf32, #tpu.memory_space<vmem>>, vector<8x8xf32>
    %c0_93 = arith.constant 0 : index
    %c36_94 = arith.constant 36 : index
    %88 = vector.load %arg13[%c0_93, %c36_94] : memref<8x362xf32, #tpu.memory_space<vmem>>, vector<8x324xf32>
    %cst_95 = arith.constant dense<0.000000e+00> : vector<8x324xf32>
    %89 = tpu.matmul %87, %88, %cst_95 {dimension_numbers = #tpu.dot_dimension_numbers<[1], [0], [0], [1], [0, 0, 1, 1], [], []>} : vector<8x8xf32>, vector<8x324xf32>, vector<8x324xf32> -> vector<8x324xf32>
    %90 = arith.addf %86, %89 : vector<8x324xf32>
    %c0_96 = arith.constant 0 : index
    %c56_97 = arith.constant 56 : index
    %91 = vector.load %arg9[%c0_96, %c56_97] : memref<8x72xf32, #tpu.memory_space<vmem>>, vector<8x8xf32>
    %c0_98 = arith.constant 0 : index
    %c37_99 = arith.constant 37 : index
    %92 = vector.load %arg13[%c0_98, %c37_99] : memref<8x362xf32, #tpu.memory_space<vmem>>, vector<8x324xf32>
    %cst_100 = arith.constant dense<0.000000e+00> : vector<8x324xf32>
    %93 = tpu.matmul %91, %92, %cst_100 {dimension_numbers = #tpu.dot_dimension_numbers<[1], [0], [0], [1], [0, 0, 1, 1], [], []>} : vector<8x8xf32>, vector<8x324xf32>, vector<8x324xf32> -> vector<8x324xf32>
    %94 = arith.addf %90, %93 : vector<8x324xf32>
    %c0_101 = arith.constant 0 : index
    %c64_102 = arith.constant 64 : index
    %95 = vector.load %arg9[%c0_101, %c64_102] : memref<8x72xf32, #tpu.memory_space<vmem>>, vector<8x8xf32>
    %c0_103 = arith.constant 0 : index
    %c38_104 = arith.constant 38 : index
    %96 = vector.load %arg13[%c0_103, %c38_104] : memref<8x362xf32, #tpu.memory_space<vmem>>, vector<8x324xf32>
    %cst_105 = arith.constant dense<0.000000e+00> : vector<8x324xf32>
    %97 = tpu.matmul %95, %96, %cst_105 {dimension_numbers = #tpu.dot_dimension_numbers<[1], [0], [0], [1], [0, 0, 1, 1], [], []>} : vector<8x8xf32>, vector<8x324xf32>, vector<8x324xf32> -> vector<8x324xf32>
    %98 = arith.addf %94, %97 : vector<8x324xf32>
    %c0_106 = arith.constant 0 : index
    %c0_107 = arith.constant 0 : index
    %99 = vector.load %arg4[%c0_106, %c0_107] : memref<324x256xf32, #tpu.memory_space<vmem>>, vector<324x256xf32>
    %cst_108 = arith.constant dense<0.000000e+00> : vector<8x256xf32>
    %100 = tpu.matmul %98, %99, %cst_108 {dimension_numbers = #tpu.dot_dimension_numbers<[1], [0], [0], [1], [0, 0, 1, 1], [], []>} : vector<8x324xf32>, vector<324x256xf32>, vector<8x256xf32> -> vector<8x256xf32>
    %c0_109 = arith.constant 0 : index
    %c0_110 = arith.constant 0 : index
    %101 = vector.load %arg10[%c0_109, %c0_110] : memref<8x1xf32, #tpu.memory_space<vmem>>, vector<8x1xf32>
    %102 = vector.broadcast %101 : vector<8x1xf32> to vector<8x256xf32>
    %103 = arith.addf %100, %102 : vector<8x256xf32>
    %c0_111 = arith.constant 0 : index
    %c0_112 = arith.constant 0 : index
    %c0_113 = arith.constant 0 : index
    %104 = vector.load %arg11[%c0_111, %c0_112, %c0_113] : memref<1x8x256xf32, #tpu.memory_space<vmem>>, vector<1x8x256xf32>
    %105 = vector.shape_cast %104 : vector<1x8x256xf32> to vector<8x256xf32>
    %106 = vector.shape_cast %103 : vector<8x256xf32> to vector<1x8x256xf32>
    tpu.vector_store %arg11[%c0_111, %c0_112, %c0_113], %106 {strides = array<i32>} : memref<1x8x256xf32, #tpu.memory_space<vmem>>, vector<1x8x256xf32>,
    return
  }
  func.func @transform_0(%arg0: i32) -> (i32, i32, i32) {
    %c0_i32 = arith.constant 0 : i32
    %c0_i32_0 = arith.constant 0 : i32
    %c0_i32_1 = arith.constant 0 : i32
    return %arg0, %c0_i32, %c0_i32_0 : i32, i32, i32
  }
  func.func @transform_1(%arg0: i32) -> (i32, i32, i32) {
    %c0_i32 = arith.constant 0 : i32
    %c0_i32_0 = arith.constant 0 : i32
    %c0_i32_1 = arith.constant 0 : i32
    return %arg0, %c0_i32, %c0_i32_0 : i32, i32, i32
  }
  func.func @transform_2(%arg0: i32) -> (i32, i32) {
    %c0_i32 = arith.constant 0 : i32
    %c0_i32_0 = arith.constant 0 : i32
    %c0_i32_1 = arith.constant 0 : i32
    return %c0_i32, %c0_i32_0 : i32, i32
  }
  func.func @transform_3(%arg0: i32) -> (i32, i32) {
    %c0_i32 = arith.constant 0 : i32
    %c0_i32_0 = arith.constant 0 : i32
    %c0_i32_1 = arith.constant 0 : i32
    return %c0_i32, %c0_i32_0 : i32, i32
  }
  func.func @transform_4(%arg0: i32) -> (i32, i32) {
    %c0_i32 = arith.constant 0 : i32
    %c0_i32_0 = arith.constant 0 : i32
    %c0_i32_1 = arith.constant 0 : i32
    return %c0_i32, %c0_i32_0 : i32, i32
  }
  func.func @transform_5(%arg0: i32) -> (i32, i32) {
    %c0_i32 = arith.constant 0 : i32
    %c0_i32_0 = arith.constant 0 : i32
    %c0_i32_1 = arith.constant 0 : i32
    return %c0_i32, %c0_i32_0 : i32, i32
  }
  func.func @transform_6(%arg0: i32) -> (i32, i32) {
    %c0_i32 = arith.constant 0 : i32
    %c0_i32_0 = arith.constant 0 : i32
    %c0_i32_1 = arith.constant 0 : i32
    return %c0_i32, %c0_i32_0 : i32, i32
  }
  func.func @transform_7(%arg0: i32) -> (i32, i32) {
    %c0_i32 = arith.constant 0 : i32
    %c0_i32_0 = arith.constant 0 : i32
    %c0_i32_1 = arith.constant 0 : i32
    return %c0_i32, %c0_i32_0 : i32, i32
  }
  func.func @transform_8(%arg0: i32) -> (i32, i32) {
    %c0_i32 = arith.constant 0 : i32
    %c0_i32_0 = arith.constant 0 : i32
    %c0_i32_1 = arith.constant 0 : i32
    return %c0_i32, %c0_i32_0 : i32, i32
  }
  func.func @transform_9(%arg0: i32) -> (i32, i32) {
    %c0_i32 = arith.constant 0 : i32
    %c0_i32_0 = arith.constant 0 : i32
    %c0_i32_1 = arith.constant 0 : i32
    return %c0_i32, %c0_i32_0 : i32, i32
  }
  func.func @transform_10(%arg0: i32) -> (i32, i32, i32) {
    %c0_i32 = arith.constant 0 : i32
    %c0_i32_0 = arith.constant 0 : i32
    %c0_i32_1 = arith.constant 0 : i32
    return %arg0, %c0_i32, %c0_i32_0 : i32, i32, i32
  }
}

</mosaic_0001>

<llo_original>
// kernel: upadd_forward.1
$region0: #{upadd_forward.1}
  #allocation0 [shape = 'u32[]', space=smem, size = 0x4, offset = 0x4, fixed_abs, tag = 'smem constant byte address 0x4 - core index']
  #allocation1 [shape = 'u32[72,128]{1,0:T(1,128)}', space=vmem, size = 0x9000, scoped, tag = 'internal scratch']
  #allocation2 [shape = 'f32[8,362]{1,0:T(8,128)}', space=vmem, size = 0x3000, scoped, tag = 'scratch operand']
  #allocation3 [shape = 'f32[8,362]{1,0:T(8,128)}', space=vmem, size = 0x3000, scoped, tag = 'scratch operand']
  %s0 = inlined_call_operand.vmem [shape: f32[2,4,256], index: 0, kind: input, shape index: {}]
  %s1 = inlined_call_operand.vmem [shape: f32[2,4,64], index: 1, kind: input, shape index: {}]
  %s2 = inlined_call_operand.vmem [shape: f32[256,324], index: 2, kind: input, shape index: {}]
  %s3 = inlined_call_operand.vmem [shape: f32[324,256], index: 3, kind: input, shape index: {}]
  %s4 = inlined_call_operand.vmem [shape: f32[64,324], index: 4, kind: input, shape index: {}]
  %s5 = inlined_call_operand.vmem [shape: f32[1,324], index: 5, kind: input, shape index: {}]
  %s6 = inlined_call_operand.vmem [shape: f32[8,72], index: 6, kind: input, shape index: {}]
  %s7 = inlined_call_operand.vmem [shape: f32[8,1], index: 7, kind: input, shape index: {}]
  %s8 = inlined_call_operand.vmem [shape: f32[8,72], index: 8, kind: input, shape index: {}]
  %s9 = inlined_call_operand.vmem [shape: f32[8,1], index: 9, kind: input, shape index: {}]
  %s10 = inlined_call_operand.vmem [shape: f32[2,8,256], index: 10, kind: output, shape index: {}]
  %s11 = sld [smem:[#allocation0]]
  $region73: #{upadd_forward.1} parent=0
    _
  %s13 = ssub.s32 1, %s11
  %s14 = scalar_select 0, %s13, %s11
  loop: start=0, step=1, limit=4
  $region2: #{upadd_forward.1} parent=0 // loop_pre_header
    _
  $region3: #{upadd_forward.1} parent=0 // loop_header
    %s16 = sphi 0, %s20
    %p17 = scmp.ge.s32.totalorder %s16, 4
    %s26 = sphi 0, %s28
    %s29 = sphi 0, %s26
    %s30 = sphi 0, %s29
    %s46 = sphi 0, %s30
    %s52 = sphi 0, %s54
    %s55 = sphi 0, %s52
    %s56 = sphi 0, %s55
    %s72 = sphi 0, %s56
    %s76 = sphi 0, %s76
    %s78 = sphi 0, %s76
    %s79 = sphi 0, %s78
    %s93 = sphi 0, %s79
    %s97 = sphi 0, %s97
    %s99 = sphi 0, %s97
    %s100 = sphi 0, %s99
    %s114 = sphi 0, %s100
    %s118 = sphi 0, %s118
    %s120 = sphi 0, %s118
    %s121 = sphi 0, %s120
    %s135 = sphi 0, %s121
    %s139 = sphi 0, %s139
    %s141 = sphi 0, %s139
    %s142 = sphi 0, %s141
    %s156 = sphi 0, %s142
    %s160 = sphi 0, %s160
    %s162 = sphi 0, %s160
    %s163 = sphi 0, %s162
    %s177 = sphi 0, %s163
    %s181 = sphi 0, %s181
    %s183 = sphi 0, %s181
    %s184 = sphi 0, %s183
    %s198 = sphi 0, %s184
    %s202 = sphi 0, %s202
    %s204 = sphi 0, %s202
    %s205 = sphi 0, %s204
    %s219 = sphi 0, %s205
    %s223 = sphi 0, %s223
    %s225 = sphi 0, %s223
    %s226 = sphi 0, %s225
    %s240 = sphi 0, %s226
    %s246 = sphi 0, %s248
    %s249 = sphi 0, %s246
    %s250 = sphi 0, %s249
    %s266 = sphi 0, %s250
  $region4: #{upadd_forward.1} parent=0 // loop_header_branch
    %19 = sbr.rel (%p17) target = $region8
  $region5: #{upadd_forward.1} parent=0 // loop_body
    %s21 = ssub.s32 %s16, 1
    %s22 = ssub.s32 %s16, 2
    %s23 = sadd.s32 %s16, 1
    %s24 = ssub.s32 %s16, %s23
    %p25 = scmp.eq.s32.totalorder %s24, 0
    %s27 = sadd.s32 %s26, 1
    %s28 = scalar_select %p25, %s26, %s27
    %p31 = pneg %p25
    %p32 = scmp.eq.s32.totalorder %s16, 1
    %p33 = por %p31, %p32
    %p34 = scmp.ne.s32.totalorder %s26, %s29
    %p35 = scmp.eq.s32.totalorder %s16, 0
    %p36 = por %p34, %p35
    %p37 = scmp.ne.s32.totalorder %s26, %s29
    %p38 = scmp.eq.s32.totalorder %s21, 1
    %p39 = por %p37, %p38
    %p40 = scmp.ne.s32.totalorder %s29, %s30
    %p41 = scmp.eq.s32.totalorder %s21, 0
    %p42 = por %p40, %p41
    %p43 = scmp.ne.s32.totalorder %s29, %s30
    %p44 = scmp.eq.s32.totalorder %s22, 1
    %p45 = por %p43, %p44
    %p47 = scmp.ne.s32.totalorder %s30, %s46
    %p48 = scmp.eq.s32.totalorder %s22, 0
    %p49 = por %p47, %p48
    %s50 = ssub.s32 %s16, %s23
    %p51 = scmp.eq.s32.totalorder %s50, 0
    %s53 = sadd.s32 %s52, 1
    %s54 = scalar_select %p51, %s52, %s53
    %p57 = pneg %p51
    %p58 = scmp.eq.s32.totalorder %s16, 1
    %p59 = por %p57, %p58
    %p60 = scmp.ne.s32.totalorder %s52, %s55
    %p61 = scmp.eq.s32.totalorder %s16, 0
    %p62 = por %p60, %p61
    %p63 = scmp.ne.s32.totalorder %s52, %s55
    %p64 = scmp.eq.s32.totalorder %s21, 1
    %p65 = por %p63, %p64
    %p66 = scmp.ne.s32.totalorder %s55, %s56
    %p67 = scmp.eq.s32.totalorder %s21, 0
    %p68 = por %p66, %p67
    %p69 = scmp.ne.s32.totalorder %s55, %s56
    %p70 = scmp.eq.s32.totalorder %s22, 1
    %p71 = por %p69, %p70
    %p73 = scmp.ne.s32.totalorder %s56, %s72
    %p74 = scmp.eq.s32.totalorder %s22, 0
    %p75 = por %p73, %p74
    %s77 = sadd.s32 %s76, 1
    %p80 = scmp.eq.s32.totalorder %s16, 1
    %p81 = scmp.ne.s32.totalorder %s76, %s78
    %p82 = scmp.eq.s32.totalorder %s16, 0
    %p83 = por %p81, %p82
    %p84 = scmp.ne.s32.totalorder %s76, %s78
    %p85 = scmp.eq.s32.totalorder %s21, 1
    %p86 = por %p84, %p85
    %p87 = scmp.ne.s32.totalorder %s78, %s79
    %p88 = scmp.eq.s32.totalorder %s21, 0
    %p89 = por %p87, %p88
    %p90 = scmp.ne.s32.totalorder %s78, %s79
    %p91 = scmp.eq.s32.totalorder %s22, 1
    %p92 = por %p90, %p91
    %p94 = scmp.ne.s32.totalorder %s79, %s93
    %p95 = scmp.eq.s32.totalorder %s22, 0
    %p96 = por %p94, %p95
    %s98 = sadd.s32 %s97, 1
    %p101 = scmp.eq.s32.totalorder %s16, 1
    %p102 = scmp.ne.s32.totalorder %s97, %s99
    %p103 = scmp.eq.s32.totalorder %s16, 0
    %p104 = por %p102, %p103
    %p105 = scmp.ne.s32.totalorder %s97, %s99
    %p106 = scmp.eq.s32.totalorder %s21, 1
    %p107 = por %p105, %p106
    %p108 = scmp.ne.s32.totalorder %s99, %s100
    %p109 = scmp.eq.s32.totalorder %s21, 0
    %p110 = por %p108, %p109
    %p111 = scmp.ne.s32.totalorder %s99, %s100
    %p112 = scmp.eq.s32.totalorder %s22, 1
    %p113 = por %p111, %p112
    %p115 = scmp.ne.s32.totalorder %s100, %s114
    %p116 = scmp.eq.s32.totalorder %s22, 0
    %p117 = por %p115, %p116
    %s119 = sadd.s32 %s118, 1
    %p122 = scmp.eq.s32.totalorder %s16, 1
    %p123 = scmp.ne.s32.totalorder %s118, %s120
    %p124 = scmp.eq.s32.totalorder %s16, 0
    %p125 = por %p123, %p124
    %p126 = scmp.ne.s32.totalorder %s118, %s120
    %p127 = scmp.eq.s32.totalorder %s21, 1
    %p128 = por %p126, %p127
    %p129 = scmp.ne.s32.totalorder %s120, %s121
    %p130 = scmp.eq.s32.totalorder %s21, 0
    %p131 = por %p129, %p130
    %p132 = scmp.ne.s32.totalorder %s120, %s121
    %p133 = scmp.eq.s32.totalorder %s22, 1
    %p134 = por %p132, %p133
    %p136 = scmp.ne.s32.totalorder %s121, %s135
    %p137 = scmp.eq.s32.totalorder %s22, 0
    %p138 = por %p136, %p137
    %s140 = sadd.s32 %s139, 1
    %p143 = scmp.eq.s32.totalorder %s16, 1
    %p144 = scmp.ne.s32.totalorder %s139, %s141
    %p145 = scmp.eq.s32.totalorder %s16, 0
    %p146 = por %p144, %p145
    %p147 = scmp.ne.s32.totalorder %s139, %s141
    %p148 = scmp.eq.s32.totalorder %s21, 1
    %p149 = por %p147, %p148
    %p150 = scmp.ne.s32.totalorder %s141, %s142
    %p151 = scmp.eq.s32.totalorder %s21, 0
    %p152 = por %p150, %p151
    %p153 = scmp.ne.s32.totalorder %s141, %s142
    %p154 = scmp.eq.s32.totalorder %s22, 1
    %p155 = por %p153, %p154
    %p157 = scmp.ne.s32.totalorder %s142, %s156
    %p158 = scmp.eq.s32.totalorder %s22, 0
    %p159 = por %p157, %p158
    %s161 = sadd.s32 %s160, 1
    %p164 = scmp.eq.s32.totalorder %s16, 1
    %p165 = scmp.ne.s32.totalorder %s160, %s162
    %p166 = scmp.eq.s32.totalorder %s16, 0
    %p167 = por %p165, %p166
    %p168 = scmp.ne.s32.totalorder %s160, %s162
    %p169 = scmp.eq.s32.totalorder %s21, 1
    %p170 = por %p168, %p169
    %p171 = scmp.ne.s32.totalorder %s162, %s163
    %p172 = scmp.eq.s32.totalorder %s21, 0
    %p173 = por %p171, %p172
    %p174 = scmp.ne.s32.totalorder %s162, %s163
    %p175 = scmp.eq.s32.totalorder %s22, 1
    %p176 = por %p174, %p175
    %p178 = scmp.ne.s32.totalorder %s163, %s177
    %p179 = scmp.eq.s32.totalorder %s22, 0
    %p180 = por %p178, %p179
    %s182 = sadd.s32 %s181, 1
    %p185 = scmp.eq.s32.totalorder %s16, 1
    %p186 = scmp.ne.s32.totalorder %s181, %s183
    %p187 = scmp.eq.s32.totalorder %s16, 0
    %p188 = por %p186, %p187
    %p189 = scmp.ne.s32.totalorder %s181, %s183
    %p190 = scmp.eq.s32.totalorder %s21, 1
    %p191 = por %p189, %p190
    %p192 = scmp.ne.s32.totalorder %s183, %s184
    %p193 = scmp.eq.s32.totalorder %s21, 0
    %p194 = por %p192, %p193
    %p195 = scmp.ne.s32.totalorder %s183, %s184
    %p196 = scmp.eq.s32.totalorder %s22, 1
    %p197 = por %p195, %p196
    %p199 = scmp.ne.s32.totalorder %s184, %s198
    %p200 = scmp.eq.s32.totalorder %s22, 0
    %p201 = por %p199, %p200
    %s203 = sadd.s32 %s202, 1
    %p206 = scmp.eq.s32.totalorder %s16, 1
    %p207 = scmp.ne.s32.totalorder %s202, %s204
    %p208 = scmp.eq.s32.totalorder %s16, 0
    %p209 = por %p207, %p208
    %p210 = scmp.ne.s32.totalorder %s202, %s204
    %p211 = scmp.eq.s32.totalorder %s21, 1
    %p212 = por %p210, %p211
    %p213 = scmp.ne.s32.totalorder %s204, %s205
    %p214 = scmp.eq.s32.totalorder %s21, 0
    %p215 = por %p213, %p214
    %p216 = scmp.ne.s32.totalorder %s204, %s205
    %p217 = scmp.eq.s32.totalorder %s22, 1
    %p218 = por %p216, %p217
    %p220 = scmp.ne.s32.totalorder %s205, %s219
    %p221 = scmp.eq.s32.totalorder %s22, 0
    %p222 = por %p220, %p221
    %s224 = sadd.s32 %s223, 1
    %p227 = scmp.eq.s32.totalorder %s16, 1
    %p228 = scmp.ne.s32.totalorder %s223, %s225
    %p229 = scmp.eq.s32.totalorder %s16, 0
    %p230 = por %p228, %p229
    %p231 = scmp.ne.s32.totalorder %s223, %s225
    %p232 = scmp.eq.s32.totalorder %s21, 1
    %p233 = por %p231, %p232
    %p234 = scmp.ne.s32.totalorder %s225, %s226
    %p235 = scmp.eq.s32.totalorder %s21, 0
    %p236 = por %p234, %p235
    %p237 = scmp.ne.s32.totalorder %s225, %s226
    %p238 = scmp.eq.s32.totalorder %s22, 1
    %p239 = por %p237, %p238
    %p241 = scmp.ne.s32.totalorder %s226, %s240
    %p242 = scmp.eq.s32.totalorder %s22, 0
    %p243 = por %p241, %p242
    %s244 = ssub.s32 %s16, %s23
    %p245 = scmp.eq.s32.totalorder %s244, 0
    %s247 = sadd.s32 %s246, 1
    %s248 = scalar_select %p245, %s246, %s247
    %p251 = pneg %p245
    %p252 = scmp.eq.s32.totalorder %s16, 1
    %p253 = por %p251, %p252
    %p254 = scmp.ne.s32.totalorder %s246, %s249
    %p255 = scmp.eq.s32.totalorder %s16, 0
    %p256 = por %p254, %p255
    %p257 = scmp.ne.s32.totalorder %s246, %s249
    %p258 = scmp.eq.s32.totalorder %s21, 1
    %p259 = por %p257, %p258
    %p260 = scmp.ne.s32.totalorder %s249, %s250
    %p261 = scmp.eq.s32.totalorder %s21, 0
    %p262 = por %p260, %p261
    %p263 = scmp.ne.s32.totalorder %s249, %s250
    %p264 = scmp.eq.s32.totalorder %s22, 1
    %p265 = por %p263, %p264
    %p267 = scmp.ne.s32.totalorder %s250, %s266
    %p268 = scmp.eq.s32.totalorder %s22, 0
    %p269 = por %p267, %p268
    %p270 = scmp.le.s32.totalorder 1, %s16
    %p271 = scmp.lt.s32.totalorder %s16, 3
    %p272 = pnand %p270, %p271
    %p273 = pneg %p272
    // Predicated region
    $region9: #{upadd_forward.1} parent=5 // pred_check
      _
    $region10: #{upadd_forward.1} parent=5 // pred_check_branch
      %275 = sbr.rel (%p272) target = $region12
    $region11: #{upadd_forward.1} parent=5 // pred_region
      %s276 = ssub.s32 %s16, 1
      // Predicated region
      $region13: #{upadd_forward.1} parent=11 // pred_check
        %p277 = pneg %p89
      $region14: #{upadd_forward.1} parent=11 // pred_check_branch
        %279 = sbr.rel (%p277) target = $region16
      $region15: #{upadd_forward.1} parent=11 // pred_region
        _
      $region16: #{upadd_forward.1} parent=11 // pred_fallthru
        _
      // Predicated region
      $region17: #{upadd_forward.1} parent=11 // pred_check
        %p280 = pneg %p110
      $region18: #{upadd_forward.1} parent=11 // pred_check_branch
        %282 = sbr.rel (%p280) target = $region20
      $region19: #{upadd_forward.1} parent=11 // pred_region
        _
      $region20: #{upadd_forward.1} parent=11 // pred_fallthru
        _
      // Predicated region
      $region21: #{upadd_forward.1} parent=11 // pred_check
        %p283 = pneg %p131
      $region22: #{upadd_forward.1} parent=11 // pred_check_branch
        %285 = sbr.rel (%p283) target = $region24
      $region23: #{upadd_forward.1} parent=11 // pred_region
        _
      $region24: #{upadd_forward.1} parent=11 // pred_fallthru
        _
      // Predicated region
      $region25: #{upadd_forward.1} parent=11 // pred_check
        %p286 = pneg %p152
      $region26: #{upadd_forward.1} parent=11 // pred_check_branch
        %288 = sbr.rel (%p286) target = $region28
      $region27: #{upadd_forward.1} parent=11 // pred_region
        _
      $region28: #{upadd_forward.1} parent=11 // pred_fallthru
        _
      // Predicated region
      $region29: #{upadd_forward.1} parent=11 // pred_check
        %p289 = pneg %p173
      $region30: #{upadd_forward.1} parent=11 // pred_check_branch
        %291 = sbr.rel (%p289) target = $region32
      $region31: #{upadd_forward.1} parent=11 // pred_region
        _
      $region32: #{upadd_forward.1} parent=11 // pred_fallthru
        _
      // Predicated region
      $region33: #{upadd_forward.1} parent=11 // pred_check
        %p292 = pneg %p194
      $region34: #{upadd_forward.1} parent=11 // pred_check_branch
        %294 = sbr.rel (%p292) target = $region36
      $region35: #{upadd_forward.1} parent=11 // pred_region
        _
      $region36: #{upadd_forward.1} parent=11 // pred_fallthru
        _
      // Predicated region
      $region37: #{upadd_forward.1} parent=11 // pred_check
        %p295 = pneg %p215
      $region38: #{upadd_forward.1} parent=11 // pred_check_branch
        %297 = sbr.rel (%p295) target = $region40
      $region39: #{upadd_forward.1} parent=11 // pred_region
        _
      $region40: #{upadd_forward.1} parent=11 // pred_fallthru
        _
      // Predicated region
      $region41: #{upadd_forward.1} parent=11 // pred_check
        %p298 = pneg %p236
      $region42: #{upadd_forward.1} parent=11 // pred_check_branch
        %300 = sbr.rel (%p298) target = $region44
      $region43: #{upadd_forward.1} parent=11 // pred_region
        _
      $region44: #{upadd_forward.1} parent=11 // pred_fallthru
        _
    $region12: #{upadd_forward.1} parent=5 // pred_fallthru
      _
    %p301 = scmp.lt.s32.totalorder %s16, 2
    // Predicated region
    $region45: #{upadd_forward.1} parent=5 // pred_check
      %p302 = pneg %p301
    $region46: #{upadd_forward.1} parent=5 // pred_check_branch
      %304 = sbr.rel (%p302) target = $region48
    $region47: #{upadd_forward.1} parent=5 // pred_region
      // Predicated region
      $region49: #{upadd_forward.1} parent=47 // pred_check
        %p305 = pneg %p36
      $region50: #{upadd_forward.1} parent=47 // pred_check_branch
        %307 = sbr.rel (%p305) target = $region52
      $region51: #{upadd_forward.1} parent=47 // pred_region
        %p308 = scmp.lt.s32.totalorder %s16, 1
        %s309 = scalar_select %p308, %s16, 1
        %s310 = smul.addr %s309, 2
        %s311 = smul.addr %s310, 4
        %s312 = scalar_lea.vmem %s0, %s311
      $region52: #{upadd_forward.1} parent=47 // pred_fallthru
        _
      // Predicated region
      $region53: #{upadd_forward.1} parent=47 // pred_check
        %p313 = pneg %p62
      $region54: #{upadd_forward.1} parent=47 // pred_check_branch
        %315 = sbr.rel (%p313) target = $region56
      $region55: #{upadd_forward.1} parent=47 // pred_region
        %p316 = scmp.lt.s32.totalorder %s16, 1
        %s317 = scalar_select %p316, %s16, 1
        %s318 = smul.addr %s317, 4
        %s319 = scalar_lea.vmem %s1, %s318
      $region56: #{upadd_forward.1} parent=47 // pred_fallthru
        _
    $region48: #{upadd_forward.1} parent=5 // pred_fallthru
      _
    %p320 = scmp.le.s32.totalorder 1, %s16
    %p321 = scmp.lt.s32.totalorder %s16, 3
    %p322 = pnand %p320, %p321
    %p323 = pneg %p322
    // Predicated region
    $region57: #{upadd_forward.1} parent=5 // pred_check
      _
    $region58: #{upadd_forward.1} parent=5 // pred_check_branch
      %325 = sbr.rel (%p322) target = $region60
    $region59: #{upadd_forward.1} parent=5 // pred_region
      %s326 = ssub.s32 %s16, 1
      %p327 = scmp.lt.s32.totalorder %s21, 1
      %s328 = scalar_select %p327, %s21, 1
      %s329 = smul.addr %s328, 2
      %s330 = smul.addr %s329, 4
      %s331 = scalar_lea.vmem %s0, %s330
      %p332 = pneg %p42
      %p333 = pneg %p39
      %p334 = scmp.lt.s32.totalorder %s21, 1
      %s335 = scalar_select %p334, %s21, 1
      %s336 = smul.addr %s335, 4
      %s337 = scalar_lea.vmem %s1, %s336
      %p338 = pneg %p68
      %p339 = pneg %p65
      %p340 = pneg %p89
      %p341 = pneg %p86
      %p342 = pneg %p110
      %p343 = pneg %p107
      %p344 = pneg %p131
      %p345 = pneg %p128
      %p346 = pneg %p152
      %p347 = pneg %p149
      %p348 = pneg %p173
      %p349 = pneg %p170
      %p350 = pneg %p194
      %p351 = pneg %p191
      %p352 = pneg %p215
      %p353 = pneg %p212
      %p354 = pneg %p236
      %p355 = pneg %p233
      %p356 = pneg %p262
      %p357 = pneg %p259
      %p358 = scmp.lt.s32.totalorder %s21, 1
      %s359 = scalar_select %p358, %s21, 1
      %s360 = smul.addr %s359, 2
      %s361 = smul.addr %s360, 8
      %s362 = scalar_lea.vmem %s10, %s361
      %p363 = scmp.lt.s32.totalorder %s21, 1
      %s364 = scalar_select %p363, %s21, 1
      %s365 = smul.addr %s364, 2
      %s366 = smul.addr %s365, 4
      %s367 = scalar_lea.vmem %s0, %s366
      %p368 = scmp.lt.s32.totalorder %s21, 1
      %s369 = scalar_select %p368, %s21, 1
      %s370 = smul.addr %s369, 4
      %s371 = scalar_lea.vmem %s1, %s370
      %p372 = scmp.lt.s32.totalorder %s21, 1
      %s373 = scalar_select %p372, %s21, 1
      %s374 = smul.addr %s373, 2
      %s375 = smul.addr %s374, 8
      %s376 = scalar_lea.vmem %s10, %s375
      %vm377 = vcmask 154624
      %378 = vst.msk [vmem:[#allocation2] sm:$0xff] %vm377, 0.0
      %vm379 = vcmask 868024
      %380 = vst.msk [vmem:[#allocation2 + $0x10] sm:$0xff] %vm379, 0.0
      %381 = vst.msk [vmem:[#allocation3] sm:$0xff] %vm377, 0.0
      %382 = vst.msk [vmem:[#allocation3 + $0x10] sm:$0xff] %vm379, 0.0
      %v383 = vld [vmem:[%s367] sm:$0xff]
      %v384 = vld [vmem:[%s2] sm:$0xff]
      %v385 = vld [vmem:[%s2 + $0x8] sm:$0xff]
      %v386 = vld [vmem:[%s2 + $0x10] sm:$0xff]
      %v387 = vld [vmem:[%s2 + $0x18] sm:$0xff]
      %v388 = vld [vmem:[%s2 + $0x20] sm:$0xff]
      %v389 = vld [vmem:[%s2 + $0x28] sm:$0xff]
      %v390 = vld [vmem:[%s2 + $0x30] sm:$0xff]
      %v391 = vld [vmem:[%s2 + $0x38] sm:$0xff]
      %v392 = vld [vmem:[%s2 + $0x40] sm:$0xff]
      %v393 = vld [vmem:[%s2 + $0x48] sm:$0xff]
      %v394 = vld [vmem:[%s2 + $0x50] sm:$0xff]
      %v395 = vld [vmem:[%s2 + $0x58] sm:$0xff]
      %v396 = vld [vmem:[%s2 + $0x60] sm:$0xff]
      %v397 = vld [vmem:[%s2 + $0x68] sm:$0xff]
      %v398 = vld [vmem:[%s2 + $0x70] sm:$0xff]
      %v399 = vld [vmem:[%s2 + $0x78] sm:$0xff]
      %v400 = vld [vmem:[%s2 + $0x80] sm:$0xff]
      %v401 = vld [vmem:[%s2 + $0x88] sm:$0xff]
      %v402 = vld [vmem:[%s2 + $0x90] sm:$0xff]
      %v403 = vld [vmem:[%s2 + $0x98] sm:$0xff]
      %v404 = vld [vmem:[%s2 + $0xa0] sm:$0xff]
      %v405 = vld [vmem:[%s2 + $0xa8] sm:$0xff]
      %v406 = vld [vmem:[%s2 + $0xb0] sm:$0xff]
      %v407 = vld [vmem:[%s2 + $0xb8] sm:$0xff]
      %v408 = vld [vmem:[%s2 + $0xc0] sm:$0xff]
      %v409 = vld [vmem:[%s2 + $0xc8] sm:$0xff]
      %v410 = vld [vmem:[%s2 + $0xd0] sm:$0xff]
      %v411 = vld [vmem:[%s2 + $0xd8] sm:$0xff]
      %v412 = vld [vmem:[%s2 + $0xe0] sm:$0xff]
      %v413 = vld [vmem:[%s2 + $0xe8] sm:$0xff]
      %v414 = vld [vmem:[%s2 + $0xf0] sm:$0xff]
      %v415 = vld [vmem:[%s2 + $0xf8] sm:$0xff]
      %v416 = vld [vmem:[%s2 + $0x100] sm:$0xff]
      %v417 = vld [vmem:[%s2 + $0x108] sm:$0xff]
      %v418 = vld [vmem:[%s2 + $0x110] sm:$0xff]
      %v419 = vld [vmem:[%s2 + $0x118] sm:$0xff]
      %v420 = vld [vmem:[%s2 + $0x120] sm:$0xff]
      %v421 = vld [vmem:[%s2 + $0x128] sm:$0xff]
      %v422 = vld [vmem:[%s2 + $0x130] sm:$0xff]
      %v423 = vld [vmem:[%s2 + $0x138] sm:$0xff]
      %v424 = vld [vmem:[%s2 + $0x140] sm:$0xff]
      %v425 = vld [vmem:[%s2 + $0x148] sm:$0xff]
      %v426 = vld [vmem:[%s2 + $0x150] sm:$0xff]
      %v427 = vld [vmem:[%s2 + $0x158] sm:$0xff]
      %v428 = vld [vmem:[%s2 + $0x160] sm:$0xff]
      %v429 = vld [vmem:[%s2 + $0x168] sm:$0xff]
      %v430 = vld [vmem:[%s2 + $0x170] sm:$0xff]
      %v431 = vld [vmem:[%s2 + $0x178] sm:$0xff]
      %v432 = vld [vmem:[%s2 + $0x180] sm:$0xff]
      %v433 = vld [vmem:[%s2 + $0x188] sm:$0xff]
      %v434 = vld [vmem:[%s2 + $0x190] sm:$0xff]
      %v435 = vld [vmem:[%s2 + $0x198] sm:$0xff]
      %v436 = vld [vmem:[%s2 + $0x1a0] sm:$0xff]
      %v437 = vld [vmem:[%s2 + $0x1a8] sm:$0xff]
      %v438 = vld [vmem:[%s2 + $0x1b0] sm:$0xff]
      %v439 = vld [vmem:[%s2 + $0x1b8] sm:$0xff]
      %v440 = vld [vmem:[%s2 + $0x1c0] sm:$0xff]
      %v441 = vld [vmem:[%s2 + $0x1c8] sm:$0xff]
      %v442 = vld [vmem:[%s2 + $0x1d0] sm:$0xff]
      %v443 = vld [vmem:[%s2 + $0x1d8] sm:$0xff]
      %v444 = vld [vmem:[%s2 + $0x1e0] sm:$0xff]
      %v445 = vld [vmem:[%s2 + $0x1e8] sm:$0xff]
      %v446 = vld [vmem:[%s2 + $0x1f0] sm:$0xff]
      %v447 = vld [vmem:[%s2 + $0x1f8] sm:$0xff]
      %v448 = vld [vmem:[%s2 + $0x200] sm:$0xff]
      %v449 = vld [vmem:[%s2 + $0x208] sm:$0xff]
      %v450 = vld [vmem:[%s2 + $0x210] sm:$0xff]
      %v451 = vld [vmem:[%s2 + $0x218] sm:$0xff]
      %v452 = vld [vmem:[%s2 + $0x220] sm:$0xff]
      %v453 = vld [vmem:[%s2 + $0x228] sm:$0xff]
      %v454 = vld [vmem:[%s2 + $0x230] sm:$0xff]
      %v455 = vld [vmem:[%s2 + $0x238] sm:$0xff]
      %v456 = vld [vmem:[%s2 + $0x240] sm:$0xff]
      %v457 = vld [vmem:[%s2 + $0x248] sm:$0xff]
      %v458 = vld [vmem:[%s2 + $0x250] sm:$0xff]
      %v459 = vld [vmem:[%s2 + $0x258] sm:$0xff]
      %v460 = vld [vmem:[%s2 + $0x260] sm:$0xff]
      %v461 = vld [vmem:[%s2 + $0x268] sm:$0xff]
      %v462 = vld [vmem:[%s2 + $0x270] sm:$0xff]
      %v463 = vld [vmem:[%s2 + $0x278] sm:$0xff]
      %v464 = vld [vmem:[%s2 + $0x280] sm:$0xff]
      %v465 = vld [vmem:[%s2 + $0x288] sm:$0xff]
      %v466 = vld [vmem:[%s2 + $0x290] sm:$0xff]
      %v467 = vld [vmem:[%s2 + $0x298] sm:$0xff]
      %v468 = vld [vmem:[%s2 + $0x2a0] sm:$0xff]
      %v469 = vld [vmem:[%s2 + $0x2a8] sm:$0xff]
      %v470 = vld [vmem:[%s2 + $0x2b0] sm:$0xff]
      %v471 = vld [vmem:[%s2 + $0x2b8] sm:$0xff]
      %v472 = vld [vmem:[%s2 + $0x2c0] sm:$0xff]
      %v473 = vld [vmem:[%s2 + $0x2c8] sm:$0xff]
      %v474 = vld [vmem:[%s2 + $0x2d0] sm:$0xff]
      %v475 = vld [vmem:[%s2 + $0x2d8] sm:$0xff]
      %v476 = vld [vmem:[%s2 + $0x2e0] sm:$0xff]
      %v477 = vld [vmem:[%s2 + $0x2e8] sm:$0xff]
      %v478 = vld [vmem:[%s2 + $0x2f0] sm:$0xff]
      %v479 = vld [vmem:[%s2 + $0x2f8] sm:$0xff]
      %481 = vst [vmem:[#allocation1] ss:$2 sm:$0xff] %v383
      %v482 = vld.sshfl [vmem:[#allocation1] sm:$0xff pattern:$0x75316420]
      %v483 = vld.sshfl [vmem:[#allocation1 + $0x8] sm:$0xff pattern:$0x75316420]
      %486 = vmatpush.msra.mxu0 %v429
      %487 = vmatpush.msra.mxu0 %v426
      %488 = vmatpush.msra.mxu0 %v423
      %489 = vmatpush.msra.mxu0 %v420
      %490 = vmatpush.msra.mxu0 %v417
      %491 = vmatpush.msra.mxu0 %v414
      %492 = vmatpush.msra.mxu0 %v411
      %493 = vmatpush.msra.mxu0 %v408
      %494 = vmatpush.msra.mxu0 %v405
      %495 = vmatpush.msra.mxu0 %v402
      %496 = vmatpush.msra.mxu0 %v399
      %497 = vmatpush.msra.mxu0 %v396
      %498 = vmatpush.msra.mxu0 %v393
      %499 = vmatpush.msra.mxu0 %v390
      %500 = vmatpush.msra.mxu0 %v387
      %501 = vmatpush.msra.mxu0 %v384
      %502 = vmatmul.f32.gmra.mxu0 %v482
      %v503 = vpop.f32.mrf.mxu0
      %v504 = vadd.f32 0.0, %v503
      %505 = vdwg.mxu0
      %506 = vmatpush.msra.mxu0 %v477
      %507 = vmatpush.msra.mxu0 %v474
      %508 = vmatpush.msra.mxu0 %v471
      %509 = vmatpush.msra.mxu0 %v468
      %510 = vmatpush.msra.mxu0 %v465
      %511 = vmatpush.msra.mxu0 %v462
      %512 = vmatpush.msra.mxu0 %v459
      %513 = vmatpush.msra.mxu0 %v456
      %514 = vmatpush.msra.mxu0 %v453
      %515 = vmatpush.msra.mxu0 %v450
      %516 = vmatpush.msra.mxu0 %v447
      %517 = vmatpush.msra.mxu0 %v444
      %518 = vmatpush.msra.mxu0 %v441
      %519 = vmatpush.msra.mxu0 %v438
      %520 = vmatpush.msra.mxu0 %v435
      %521 = vmatpush.msra.mxu0 %v432
      %522 = vmatmul.f32.gmra.mxu0 %v483
      %v523 = vpop.f32.mrf.mxu0
      %v524 = vadd.f32 %v504, %v523
      %525 = vdwg.mxu0
      %526 = vmatpush.msra.mxu0 %v430
      %527 = vmatpush.msra.mxu0 %v427
      %528 = vmatpush.msra.mxu0 %v424
      %529 = vmatpush.msra.mxu0 %v421
      %530 = vmatpush.msra.mxu0 %v418
      %531 = vmatpush.msra.mxu0 %v415
      %532 = vmatpush.msra.mxu0 %v412
      %533 = vmatpush.msra.mxu0 %v409
      %534 = vmatpush.msra.mxu0 %v406
      %535 = vmatpush.msra.mxu0 %v403
      %536 = vmatpush.msra.mxu0 %v400
      %537 = vmatpush.msra.mxu0 %v397
      %538 = vmatpush.msra.mxu0 %v394
      %539 = vmatpush.msra.mxu0 %v391
      %540 = vmatpush.msra.mxu0 %v388
      %541 = vmatpush.msra.mxu0 %v385
      %542 = vmatmul.f32.gmra.mxu0 %v482
      %v543 = vpop.f32.mrf.mxu0
      %v544 = vadd.f32 0.0, %v543
      %545 = vdwg.mxu0
      %546 = vmatpush.msra.mxu0 %v478
      %547 = vmatpush.msra.mxu0 %v475
      %548 = vmatpush.msra.mxu0 %v472
      %549 = vmatpush.msra.mxu0 %v469
      %550 = vmatpush.msra.mxu0 %v466
      %551 = vmatpush.msra.mxu0 %v463
      %552 = vmatpush.msra.mxu0 %v460
      %553 = vmatpush.msra.mxu0 %v457
      %554 = vmatpush.msra.mxu0 %v454
      %555 = vmatpush.msra.mxu0 %v451
      %556 = vmatpush.msra.mxu0 %v448
      %557 = vmatpush.msra.mxu0 %v445
      %558 = vmatpush.msra.mxu0 %v442
      %559 = vmatpush.msra.mxu0 %v439
      %560 = vmatpush.msra.mxu0 %v436
      %561 = vmatpush.msra.mxu0 %v433
      %562 = vmatmul.f32.gmra.mxu0 %v483
      %v563 = vpop.f32.mrf.mxu0
      %v564 = vadd.f32 %v544, %v563
      %565 = vdwg.mxu0
      %566 = vmatpush.msra.mxu0 %v431
      %567 = vmatpush.msra.mxu0 %v428
      %568 = vmatpush.msra.mxu0 %v425
      %569 = vmatpush.msra.mxu0 %v422
      %570 = vmatpush.msra.mxu0 %v419
      %571 = vmatpush.msra.mxu0 %v416
      %572 = vmatpush.msra.mxu0 %v413
      %573 = vmatpush.msra.mxu0 %v410
      %574 = vmatpush.msra.mxu0 %v407
      %575 = vmatpush.msra.mxu0 %v404
      %576 = vmatpush.msra.mxu0 %v401
      %577 = vmatpush.msra.mxu0 %v398
      %578 = vmatpush.msra.mxu0 %v395
      %579 = vmatpush.msra.mxu0 %v392
      %580 = vmatpush.msra.mxu0 %v389
      %581 = vmatpush.msra.mxu0 %v386
      %582 = vmatmul.f32.gmra.mxu0 %v482
      %v583 = vpop.f32.mrf.mxu0
      %v584 = vadd.f32 0.0, %v583
      %585 = vdwg.mxu0
      %586 = vmatpush.msra.mxu0 %v479
      %587 = vmatpush.msra.mxu0 %v476
      %588 = vmatpush.msra.mxu0 %v473
      %589 = vmatpush.msra.mxu0 %v470
      %590 = vmatpush.msra.mxu0 %v467
      %591 = vmatpush.msra.mxu0 %v464
      %592 = vmatpush.msra.mxu0 %v461
      %593 = vmatpush.msra.mxu0 %v458
      %594 = vmatpush.msra.mxu0 %v455
      %595 = vmatpush.msra.mxu0 %v452
      %596 = vmatpush.msra.mxu0 %v449
      %597 = vmatpush.msra.mxu0 %v446
      %598 = vmatpush.msra.mxu0 %v443
      %599 = vmatpush.msra.mxu0 %v440
      %600 = vmatpush.msra.mxu0 %v437
      %601 = vmatpush.msra.mxu0 %v434
      %602 = vmatmul.f32.gmra.mxu0 %v483
      %v603 = vpop.f32.mrf.mxu0
      %v604 = vadd.f32 %v584, %v603
      %605 = vdwg.mxu0
      %609 = vrot.lane.b32.xlu0 %v524, 19
      %v610 = vpop.permute.xlu0 %609
      %611 = vrot.lane.b32.xlu0 %v564, 19
      %v612 = vpop.permute.xlu0 %611
      %613 = vrot.lane.b32.xlu0 %v604, 19
      %v614 = vpop.permute.xlu0 %613
      %v615 = vsel %vm377, %v610, %v612
      %v616 = vsel %vm377, %v612, %v614
      %vm620 = vcmask 1043608
      %621 = vst.msk [vmem:[#allocation2] sm:$0xf] %vm620, %v610
      %622 = vst [vmem:[#allocation2 + $0x8] sm:$0xf] %v615
      %vm623 = vcmask 707584
      %624 = vst.msk [vmem:[#allocation2 + $0x10] sm:$0xf] %vm623, %v616
      %v625 = vld [vmem:[%s371] sm:$0xf]
      %v626 = vld [vmem:[%s4] sm:$0xff]
      %v627 = vld [vmem:[%s4 + $0x8] sm:$0xff]
      %v628 = vld [vmem:[%s4 + $0x10] sm:$0xff]
      %v629 = vld [vmem:[%s4 + $0x18] sm:$0xff]
      %v630 = vld [vmem:[%s4 + $0x20] sm:$0xff]
      %v631 = vld [vmem:[%s4 + $0x28] sm:$0xff]
      %v632 = vld [vmem:[%s4 + $0x30] sm:$0xff]
      %v633 = vld [vmem:[%s4 + $0x38] sm:$0xff]
      %v634 = vld [vmem:[%s4 + $0x40] sm:$0xff]
      %v635 = vld [vmem:[%s4 + $0x48] sm:$0xff]
      %v636 = vld [vmem:[%s4 + $0x50] sm:$0xff]
      %v637 = vld [vmem:[%s4 + $0x58] sm:$0xff]
      %v638 = vld [vmem:[%s4 + $0x60] sm:$0xff]
      %v639 = vld [vmem:[%s4 + $0x68] sm:$0xff]
      %v640 = vld [vmem:[%s4 + $0x70] sm:$0xff]
      %v641 = vld [vmem:[%s4 + $0x78] sm:$0xff]
      %v642 = vld [vmem:[%s4 + $0x80] sm:$0xff]
      %v643 = vld [vmem:[%s4 + $0x88] sm:$0xff]
      %v644 = vld [vmem:[%s4 + $0x90] sm:$0xff]
      %v645 = vld [vmem:[%s4 + $0x98] sm:$0xff]
      %v646 = vld [vmem:[%s4 + $0xa0] sm:$0xff]
      %v647 = vld [vmem:[%s4 + $0xa8] sm:$0xff]
      %v648 = vld [vmem:[%s4 + $0xb0] sm:$0xff]
      %v649 = vld [vmem:[%s4 + $0xb8] sm:$0xff]
      %vm650 = vcmask 523264
      %v652 = vsel %vm650, %v625, 0
      %654 = vmatpush.msra.mxu0 0.0
      %655 = vmatpush.msra.mxu0 0.0
      %656 = vmatpush.msra.mxu0 0.0
      %657 = vmatpush.msra.mxu0 0.0
      %658 = vmatpush.msra.mxu0 0.0
      %659 = vmatpush.msra.mxu0 0.0
      %660 = vmatpush.msra.mxu0 0.0
      %661 = vmatpush.msra.mxu0 0.0
      %662 = vmatpush.msra.mxu0 %v647
      %663 = vmatpush.msra.mxu0 %v644
      %664 = vmatpush.msra.mxu0 %v641
      %665 = vmatpush.msra.mxu0 %v638
      %666 = vmatpush.msra.mxu0 %v635
      %667 = vmatpush.msra.mxu0 %v632
      %668 = vmatpush.msra.mxu0 %v629
      %669 = vmatpush.msra.mxu0 %v626
      %670 = vmatmul.f32.gmra.mxu0 %v652
      %v671 = vpop.f32.mrf.mxu0
      %v672 = vadd.f32 0.0, %v671
      %673 = vdwg.mxu0
      %674 = vmatpush.msra.mxu0 0.0
      %675 = vmatpush.msra.mxu0 0.0
      %676 = vmatpush.msra.mxu0 0.0
      %677 = vmatpush.msra.mxu0 0.0
      %678 = vmatpush.msra.mxu0 0.0
      %679 = vmatpush.msra.mxu0 0.0
      %680 = vmatpush.msra.mxu0 0.0
      %681 = vmatpush.msra.mxu0 0.0
      %682 = vmatpush.msra.mxu0 %v648
      %683 = vmatpush.msra.mxu0 %v645
      %684 = vmatpush.msra.mxu0 %v642
      %685 = vmatpush.msra.mxu0 %v639
      %686 = vmatpush.msra.mxu0 %v636
      %687 = vmatpush.msra.mxu0 %v633
      %688 = vmatpush.msra.mxu0 %v630
      %689 = vmatpush.msra.mxu0 %v627
      %690 = vmatmul.f32.gmra.mxu0 %v652
      %v691 = vpop.f32.mrf.mxu0
      %v692 = vadd.f32 0.0, %v691
      %693 = vdwg.mxu0
      %694 = vmatpush.msra.mxu0 0.0
      %695 = vmatpush.msra.mxu0 0.0
      %696 = vmatpush.msra.mxu0 0.0
      %697 = vmatpush.msra.mxu0 0.0
      %698 = vmatpush.msra.mxu0 0.0
      %699 = vmatpush.msra.mxu0 0.0
      %700 = vmatpush.msra.mxu0 0.0
      %701 = vmatpush.msra.mxu0 0.0
      %702 = vmatpush.msra.mxu0 %v649
      %703 = vmatpush.msra.mxu0 %v646
      %704 = vmatpush.msra.mxu0 %v643
      %705 = vmatpush.msra.mxu0 %v640
      %706 = vmatpush.msra.mxu0 %v637
      %707 = vmatpush.msra.mxu0 %v634
      %708 = vmatpush.msra.mxu0 %v631
      %709 = vmatpush.msra.mxu0 %v628
      %710 = vmatmul.f32.gmra.mxu0 %v652
      %v711 = vpop.f32.mrf.mxu0
      %v712 = vadd.f32 0.0, %v711
      %713 = vdwg.mxu0
      %v717 = vrot.slane %v672, 4
      %v718 = vrot.slane %v692, 4
      %v719 = vrot.slane %v712, 4
      %720 = vrot.lane.b32.xlu0 %v717, 19
      %v721 = vpop.permute.xlu0 %720
      %722 = vrot.lane.b32.xlu0 %v718, 19
      %v723 = vpop.permute.xlu0 %722
      %724 = vrot.lane.b32.xlu0 %v719, 19
      %v725 = vpop.permute.xlu0 %724
      %v726 = vsel %vm377, %v721, %v723
      %v727 = vsel %vm377, %v723, %v725
      %vm731 = vcmask 1047708
      %732 = vst.msk [vmem:[#allocation2] sm:$0xf0] %vm731, %v721
      %733 = vst [vmem:[#allocation2 + $0x8] sm:$0xf0] %v726
      %vm734 = vcmask 711684
      %735 = vst.msk [vmem:[#allocation2 + $0x10] sm:$0xf0] %vm734, %v727
      %v736 = vld [vmem:[%s6] sm:$0xff]
      %v737 = vld [vmem:[#allocation2] sm:$0xff]
      %v738 = vld [vmem:[#allocation2 + $0x8] sm:$0xff]
      %v739 = vld [vmem:[#allocation2 + $0x10] sm:$0xff]
      %741 = vrot.lane.b32.xlu0 %v736, 120
      %v742 = vpop.permute.xlu0 %741
      %746 = vrot.lane.b32.xlu0 %v737, 127
      %v747 = vpop.permute.xlu0 %746
      %748 = vrot.lane.b32.xlu0 %v738, 127
      %v749 = vpop.permute.xlu0 %748
      %750 = vrot.lane.b32.xlu0 %v739, 127
      %v751 = vpop.permute.xlu0 %750
      %vm752 = vcmask 1039360
      %v753 = vsel %vm752, %v747, %v749
      %v754 = vsel %vm752, %v749, %v751
      %vm758 = vcmask 64512
      %v759 = vsel %vm758, %v742, 0
      %761 = vmatpush.msra.mxu0 0.0
      %762 = vmatpush.msra.mxu0 0.0
      %763 = vmatpush.msra.mxu0 0.0
      %764 = vmatpush.msra.mxu0 0.0
      %765 = vmatpush.msra.mxu0 0.0
      %766 = vmatpush.msra.mxu0 0.0
      %767 = vmatpush.msra.mxu0 0.0
      %768 = vmatpush.msra.mxu0 0.0
      %769 = vmatpush.msra.mxu0 0.0
      %770 = vmatpush.msra.mxu0 0.0
      %771 = vmatpush.msra.mxu0 0.0
      %772 = vmatpush.msra.mxu0 0.0
      %773 = vmatpush.msra.mxu0 0.0
      %774 = vmatpush.msra.mxu0 0.0
      %775 = vmatpush.msra.mxu0 0.0
      %776 = vmatpush.msra.mxu0 %v753
      %777 = vmatmul.f32.gmra.mxu0 %v759
      %v778 = vpop.f32.mrf.mxu0
      %v779 = vadd.f32 0.0, %v778
      %780 = vdwg.mxu0
      %781 = vmatpush.msra.mxu0 0.0
      %782 = vmatpush.msra.mxu0 0.0
      %783 = vmatpush.msra.mxu0 0.0
      %784 = vmatpush.msra.mxu0 0.0
      %785 = vmatpush.msra.mxu0 0.0
      %786 = vmatpush.msra.mxu0 0.0
      %787 = vmatpush.msra.mxu0 0.0
      %788 = vmatpush.msra.mxu0 0.0
      %789 = vmatpush.msra.mxu0 0.0
      %790 = vmatpush.msra.mxu0 0.0
      %791 = vmatpush.msra.mxu0 0.0
      %792 = vmatpush.msra.mxu0 0.0
      %793 = vmatpush.msra.mxu0 0.0
      %794 = vmatpush.msra.mxu0 0.0
      %795 = vmatpush.msra.mxu0 0.0
      %796 = vmatpush.msra.mxu0 %v754
      %797 = vmatmul.f32.gmra.mxu0 %v759
      %v798 = vpop.f32.mrf.mxu0
      %v799 = vadd.f32 0.0, %v798
      %800 = vdwg.mxu0
      %801 = vmatpush.msra.mxu0 0.0
      %802 = vmatpush.msra.mxu0 0.0
      %803 = vmatpush.msra.mxu0 0.0
      %804 = vmatpush.msra.mxu0 0.0
      %805 = vmatpush.msra.mxu0 0.0
      %806 = vmatpush.msra.mxu0 0.0
      %807 = vmatpush.msra.mxu0 0.0
      %808 = vmatpush.msra.mxu0 0.0
      %809 = vmatpush.msra.mxu0 0.0
      %810 = vmatpush.msra.mxu0 0.0
      %811 = vmatpush.msra.mxu0 0.0
      %812 = vmatpush.msra.mxu0 0.0
      %813 = vmatpush.msra.mxu0 0.0
      %814 = vmatpush.msra.mxu0 0.0
      %815 = vmatpush.msra.mxu0 0.0
      %816 = vmatpush.msra.mxu0 %v751
      %817 = vmatmul.f32.gmra.mxu0 %v759
      %v818 = vpop.f32.mrf.mxu0
      %v819 = vadd.f32 0.0, %v818
      %820 = vdwg.mxu0
      %v821 = vsel %vm758, %v736, 0
      %823 = vmatpush.msra.mxu0 0.0
      %824 = vmatpush.msra.mxu0 0.0
      %825 = vmatpush.msra.mxu0 0.0
      %826 = vmatpush.msra.mxu0 0.0
      %827 = vmatpush.msra.mxu0 0.0
      %828 = vmatpush.msra.mxu0 0.0
      %829 = vmatpush.msra.mxu0 0.0
      %830 = vmatpush.msra.mxu0 0.0
      %831 = vmatpush.msra.mxu0 0.0
      %832 = vmatpush.msra.mxu0 0.0
      %833 = vmatpush.msra.mxu0 0.0
      %834 = vmatpush.msra.mxu0 0.0
      %835 = vmatpush.msra.mxu0 0.0
      %836 = vmatpush.msra.mxu0 0.0
      %837 = vmatpush.msra.mxu0 0.0
      %838 = vmatpush.msra.mxu0 %v737
      %839 = vmatmul.f32.gmra.mxu0 %v821
      %v840 = vpop.f32.mrf.mxu0
      %v841 = vadd.f32 %v779, %v840
      %842 = vdwg.mxu0
      %843 = vmatpush.msra.mxu0 0.0
      %844 = vmatpush.msra.mxu0 0.0
      %845 = vmatpush.msra.mxu0 0.0
      %846 = vmatpush.msra.mxu0 0.0
      %847 = vmatpush.msra.mxu0 0.0
      %848 = vmatpush.msra.mxu0 0.0
      %849 = vmatpush.msra.mxu0 0.0
      %850 = vmatpush.msra.mxu0 0.0
      %851 = vmatpush.msra.mxu0 0.0
      %852 = vmatpush.msra.mxu0 0.0
      %853 = vmatpush.msra.mxu0 0.0
      %854 = vmatpush.msra.mxu0 0.0
      %855 = vmatpush.msra.mxu0 0.0
      %856 = vmatpush.msra.mxu0 0.0
      %857 = vmatpush.msra.mxu0 0.0
      %858 = vmatpush.msra.mxu0 %v738
      %859 = vmatmul.f32.gmra.mxu0 %v821
      %v860 = vpop.f32.mrf.mxu0
      %v861 = vadd.f32 %v799, %v860
      %862 = vdwg.mxu0
      %863 = vmatpush.msra.mxu0 0.0
      %864 = vmatpush.msra.mxu0 0.0
      %865 = vmatpush.msra.mxu0 0.0
      %866 = vmatpush.msra.mxu0 0.0
      %867 = vmatpush.msra.mxu0 0.0
      %868 = vmatpush.msra.mxu0 0.0
      %869 = vmatpush.msra.mxu0 0.0
      %870 = vmatpush.msra.mxu0 0.0
      %871 = vmatpush.msra.mxu0 0.0
      %872 = vmatpush.msra.mxu0 0.0
      %873 = vmatpush.msra.mxu0 0.0
      %874 = vmatpush.msra.mxu0 0.0
      %875 = vmatpush.msra.mxu0 0.0
      %876 = vmatpush.msra.mxu0 0.0
      %877 = vmatpush.msra.mxu0 0.0
      %878 = vmatpush.msra.mxu0 %v739
      %879 = vmatmul.f32.gmra.mxu0 %v821
      %v880 = vpop.f32.mrf.mxu0
      %v881 = vadd.f32 %v819, %v880
      %882 = vdwg.mxu0
      %883 = vrot.lane.b32.xlu0 %v736, 112
      %v884 = vpop.permute.xlu0 %883
      %885 = vrot.lane.b32.xlu0 %v737, 126
      %v886 = vpop.permute.xlu0 %885
      %887 = vrot.lane.b32.xlu0 %v738, 126
      %v888 = vpop.permute.xlu0 %887
      %889 = vrot.lane.b32.xlu0 %v739, 126
      %v890 = vpop.permute.xlu0 %889
      %vm891 = vcmask 1031168
      %v892 = vsel %vm891, %v886, %v888
      %v893 = vsel %vm891, %v888, %v890
      %v897 = vsel %vm758, %v884, 0
      %899 = vmatpush.msra.mxu0 0.0
      %900 = vmatpush.msra.mxu0 0.0
      %901 = vmatpush.msra.mxu0 0.0
      %902 = vmatpush.msra.mxu0 0.0
      %903 = vmatpush.msra.mxu0 0.0
      %904 = vmatpush.msra.mxu0 0.0
      %905 = vmatpush.msra.mxu0 0.0
      %906 = vmatpush.msra.mxu0 0.0
      %907 = vmatpush.msra.mxu0 0.0
      %908 = vmatpush.msra.mxu0 0.0
      %909 = vmatpush.msra.mxu0 0.0
      %910 = vmatpush.msra.mxu0 0.0
      %911 = vmatpush.msra.mxu0 0.0
      %912 = vmatpush.msra.mxu0 0.0
      %913 = vmatpush.msra.mxu0 0.0
      %914 = vmatpush.msra.mxu0 %v892
      %915 = vmatmul.f32.gmra.mxu0 %v897
      %v916 = vpop.f32.mrf.mxu0
      %v917 = vadd.f32 0.0, %v916
      %918 = vdwg.mxu0
      %919 = vmatpush.msra.mxu0 0.0
      %920 = vmatpush.msra.mxu0 0.0
      %921 = vmatpush.msra.mxu0 0.0
      %922 = vmatpush.msra.mxu0 0.0
      %923 = vmatpush.msra.mxu0 0.0
      %924 = vmatpush.msra.mxu0 0.0
      %925 = vmatpush.msra.mxu0 0.0
      %926 = vmatpush.msra.mxu0 0.0
      %927 = vmatpush.msra.mxu0 0.0
      %928 = vmatpush.msra.mxu0 0.0
      %929 = vmatpush.msra.mxu0 0.0
      %930 = vmatpush.msra.mxu0 0.0
      %931 = vmatpush.msra.mxu0 0.0
      %932 = vmatpush.msra.mxu0 0.0
      %933 = vmatpush.msra.mxu0 0.0
      %934 = vmatpush.msra.mxu0 %v893
      %935 = vmatmul.f32.gmra.mxu0 %v897
      %v936 = vpop.f32.mrf.mxu0
      %v937 = vadd.f32 0.0, %v936
      %938 = vdwg.mxu0
      %939 = vmatpush.msra.mxu0 0.0
      %940 = vmatpush.msra.mxu0 0.0
      %941 = vmatpush.msra.mxu0 0.0
      %942 = vmatpush.msra.mxu0 0.0
      %943 = vmatpush.msra.mxu0 0.0
      %944 = vmatpush.msra.mxu0 0.0
      %945 = vmatpush.msra.mxu0 0.0
      %946 = vmatpush.msra.mxu0 0.0
      %947 = vmatpush.msra.mxu0 0.0
      %948 = vmatpush.msra.mxu0 0.0
      %949 = vmatpush.msra.mxu0 0.0
      %950 = vmatpush.msra.mxu0 0.0
      %951 = vmatpush.msra.mxu0 0.0
      %952 = vmatpush.msra.mxu0 0.0
      %953 = vmatpush.msra.mxu0 0.0
      %954 = vmatpush.msra.mxu0 %v890
      %955 = vmatmul.f32.gmra.mxu0 %v897
      %v956 = vpop.f32.mrf.mxu0
      %v957 = vadd.f32 0.0, %v956
      %958 = vdwg.mxu0
      %v959 = vadd.f32 %v841, %v917
      %v960 = vadd.f32 %v861, %v937
      %v961 = vadd.f32 %v881, %v957
      %962 = vrot.lane.b32.xlu0 %v736, 104
      %v963 = vpop.permute.xlu0 %962
      %964 = vrot.lane.b32.xlu0 %v737, 110
      %v965 = vpop.permute.xlu0 %964
      %966 = vrot.lane.b32.xlu0 %v738, 110
      %v967 = vpop.permute.xlu0 %966
      %968 = vrot.lane.b32.xlu0 %v739, 110
      %v969 = vpop.permute.xlu0 %968
      %vm970 = vcmask 900096
      %v971 = vsel %vm970, %v965, %v967
      %v972 = vsel %vm970, %v967, %v969
      %v976 = vsel %vm758, %v963, 0
      %978 = vmatpush.msra.mxu0 0.0
      %979 = vmatpush.msra.mxu0 0.0
      %980 = vmatpush.msra.mxu0 0.0
      %981 = vmatpush.msra.mxu0 0.0
      %982 = vmatpush.msra.mxu0 0.0
      %983 = vmatpush.msra.mxu0 0.0
      %984 = vmatpush.msra.mxu0 0.0
      %985 = vmatpush.msra.mxu0 0.0
      %986 = vmatpush.msra.mxu0 0.0
      %987 = vmatpush.msra.mxu0 0.0
      %988 = vmatpush.msra.mxu0 0.0
      %989 = vmatpush.msra.mxu0 0.0
      %990 = vmatpush.msra.mxu0 0.0
      %991 = vmatpush.msra.mxu0 0.0
      %992 = vmatpush.msra.mxu0 0.0
      %993 = vmatpush.msra.mxu0 %v971
      %994 = vmatmul.f32.gmra.mxu0 %v976
      %v995 = vpop.f32.mrf.mxu0
      %v996 = vadd.f32 0.0, %v995
      %997 = vdwg.mxu0
      %998 = vmatpush.msra.mxu0 0.0
      %999 = vmatpush.msra.mxu0 0.0
      %1000 = vmatpush.msra.mxu0 0.0
      %1001 = vmatpush.msra.mxu0 0.0
      %1002 = vmatpush.msra.mxu0 0.0
      %1003 = vmatpush.msra.mxu0 0.0
      %1004 = vmatpush.msra.mxu0 0.0
      %1005 = vmatpush.msra.mxu0 0.0
      %1006 = vmatpush.msra.mxu0 0.0
      %1007 = vmatpush.msra.mxu0 0.0
      %1008 = vmatpush.msra.mxu0 0.0
      %1009 = vmatpush.msra.mxu0 0.0
      %1010 = vmatpush.msra.mxu0 0.0
      %1011 = vmatpush.msra.mxu0 0.0
      %1012 = vmatpush.msra.mxu0 0.0
      %1013 = vmatpush.msra.mxu0 %v972
      %1014 = vmatmul.f32.gmra.mxu0 %v976
      %v1015 = vpop.f32.mrf.mxu0
      %v1016 = vadd.f32 0.0, %v1015
      %1017 = vdwg.mxu0
      %1018 = vmatpush.msra.mxu0 0.0
      %1019 = vmatpush.msra.mxu0 0.0
      %1020 = vmatpush.msra.mxu0 0.0
      %1021 = vmatpush.msra.mxu0 0.0
      %1022 = vmatpush.msra.mxu0 0.0
      %1023 = vmatpush.msra.mxu0 0.0
      %1024 = vmatpush.msra.mxu0 0.0
      %1025 = vmatpush.msra.mxu0 0.0
      %1026 = vmatpush.msra.mxu0 0.0
      %1027 = vmatpush.msra.mxu0 0.0
      %1028 = vmatpush.msra.mxu0 0.0
      %1029 = vmatpush.msra.mxu0 0.0
      %1030 = vmatpush.msra.mxu0 0.0
      %1031 = vmatpush.msra.mxu0 0.0
      %1032 = vmatpush.msra.mxu0 0.0
      %1033 = vmatpush.msra.mxu0 %v969
      %1034 = vmatmul.f32.gmra.mxu0 %v976
      %v1035 = vpop.f32.mrf.mxu0
      %v1036 = vadd.f32 0.0, %v1035
      %1037 = vdwg.mxu0
      %v1038 = vadd.f32 %v959, %v996
      %v1039 = vadd.f32 %v960, %v1016
      %v1040 = vadd.f32 %v961, %v1036
      %1041 = vrot.lane.b32.xlu0 %v736, 96
      %v1042 = vpop.permute.xlu0 %1041
      %1043 = vrot.lane.b32.xlu0 %v737, 109
      %v1044 = vpop.permute.xlu0 %1043
      %1045 = vrot.lane.b32.xlu0 %v738, 109
      %v1046 = vpop.permute.xlu0 %1045
      %1047 = vrot.lane.b32.xlu0 %v739, 109
      %v1048 = vpop.permute.xlu0 %1047
      %vm1049 = vcmask 891904
      %v1050 = vsel %vm1049, %v1044, %v1046
      %v1051 = vsel %vm1049, %v1046, %v1048
      %v1055 = vsel %vm758, %v1042, 0
      %1057 = vmatpush.msra.mxu0 0.0
      %1058 = vmatpush.msra.mxu0 0.0
      %1059 = vmatpush.msra.mxu0 0.0
      %1060 = vmatpush.msra.mxu0 0.0
      %1061 = vmatpush.msra.mxu0 0.0
      %1062 = vmatpush.msra.mxu0 0.0
      %1063 = vmatpush.msra.mxu0 0.0
      %1064 = vmatpush.msra.mxu0 0.0
      %1065 = vmatpush.msra.mxu0 0.0
      %1066 = vmatpush.msra.mxu0 0.0
      %1067 = vmatpush.msra.mxu0 0.0
      %1068 = vmatpush.msra.mxu0 0.0
      %1069 = vmatpush.msra.mxu0 0.0
      %1070 = vmatpush.msra.mxu0 0.0
      %1071 = vmatpush.msra.mxu0 0.0
      %1072 = vmatpush.msra.mxu0 %v1050
      %1073 = vmatmul.f32.gmra.mxu0 %v1055
      %v1074 = vpop.f32.mrf.mxu0
      %v1075 = vadd.f32 0.0, %v1074
      %1076 = vdwg.mxu0
      %1077 = vmatpush.msra.mxu0 0.0
      %1078 = vmatpush.msra.mxu0 0.0
      %1079 = vmatpush.msra.mxu0 0.0
      %1080 = vmatpush.msra.mxu0 0.0
      %1081 = vmatpush.msra.mxu0 0.0
      %1082 = vmatpush.msra.mxu0 0.0
      %1083 = vmatpush.msra.mxu0 0.0
      %1084 = vmatpush.msra.mxu0 0.0
      %1085 = vmatpush.msra.mxu0 0.0
      %1086 = vmatpush.msra.mxu0 0.0
      %1087 = vmatpush.msra.mxu0 0.0
      %1088 = vmatpush.msra.mxu0 0.0
      %1089 = vmatpush.msra.mxu0 0.0
      %1090 = vmatpush.msra.mxu0 0.0
      %1091 = vmatpush.msra.mxu0 0.0
      %1092 = vmatpush.msra.mxu0 %v1051
      %1093 = vmatmul.f32.gmra.mxu0 %v1055
      %v1094 = vpop.f32.mrf.mxu0
      %v1095 = vadd.f32 0.0, %v1094
      %1096 = vdwg.mxu0
      %1097 = vmatpush.msra.mxu0 0.0
      %1098 = vmatpush.msra.mxu0 0.0
      %1099 = vmatpush.msra.mxu0 0.0
      %1100 = vmatpush.msra.mxu0 0.0
      %1101 = vmatpush.msra.mxu0 0.0
      %1102 = vmatpush.msra.mxu0 0.0
      %1103 = vmatpush.msra.mxu0 0.0
      %1104 = vmatpush.msra.mxu0 0.0
      %1105 = vmatpush.msra.mxu0 0.0
      %1106 = vmatpush.msra.mxu0 0.0
      %1107 = vmatpush.msra.mxu0 0.0
      %1108 = vmatpush.msra.mxu0 0.0
      %1109 = vmatpush.msra.mxu0 0.0
      %1110 = vmatpush.msra.mxu0 0.0
      %1111 = vmatpush.msra.mxu0 0.0
      %1112 = vmatpush.msra.mxu0 %v1048
      %1113 = vmatmul.f32.gmra.mxu0 %v1055
      %v1114 = vpop.f32.mrf.mxu0
      %v1115 = vadd.f32 0.0, %v1114
      %1116 = vdwg.mxu0
      %v1117 = vadd.f32 %v1038, %v1075
      %v1118 = vadd.f32 %v1039, %v1095
      %v1119 = vadd.f32 %v1040, %v1115
      %1120 = vrot.lane.b32.xlu0 %v736, 88
      %v1121 = vpop.permute.xlu0 %1120
      %1122 = vrot.lane.b32.xlu0 %v737, 108
      %v1123 = vpop.permute.xlu0 %1122
      %1124 = vrot.lane.b32.xlu0 %v738, 108
      %v1125 = vpop.permute.xlu0 %1124
      %1126 = vrot.lane.b32.xlu0 %v739, 108
      %v1127 = vpop.permute.xlu0 %1126
      %vm1128 = vcmask 883712
      %v1129 = vsel %vm1128, %v1123, %v1125
      %v1130 = vsel %vm1128, %v1125, %v1127
      %v1134 = vsel %vm758, %v1121, 0
      %1136 = vmatpush.msra.mxu0 0.0
      %1137 = vmatpush.msra.mxu0 0.0
      %1138 = vmatpush.msra.mxu0 0.0
      %1139 = vmatpush.msra.mxu0 0.0
      %1140 = vmatpush.msra.mxu0 0.0
      %1141 = vmatpush.msra.mxu0 0.0
      %1142 = vmatpush.msra.mxu0 0.0
      %1143 = vmatpush.msra.mxu0 0.0
      %1144 = vmatpush.msra.mxu0 0.0
      %1145 = vmatpush.msra.mxu0 0.0
      %1146 = vmatpush.msra.mxu0 0.0
      %1147 = vmatpush.msra.mxu0 0.0
      %1148 = vmatpush.msra.mxu0 0.0
      %1149 = vmatpush.msra.mxu0 0.0
      %1150 = vmatpush.msra.mxu0 0.0
      %1151 = vmatpush.msra.mxu0 %v1129
      %1152 = vmatmul.f32.gmra.mxu0 %v1134
      %v1153 = vpop.f32.mrf.mxu0
      %v1154 = vadd.f32 0.0, %v1153
      %1155 = vdwg.mxu0
      %1156 = vmatpush.msra.mxu0 0.0
      %1157 = vmatpush.msra.mxu0 0.0
      %1158 = vmatpush.msra.mxu0 0.0
      %1159 = vmatpush.msra.mxu0 0.0
      %1160 = vmatpush.msra.mxu0 0.0
      %1161 = vmatpush.msra.mxu0 0.0
      %1162 = vmatpush.msra.mxu0 0.0
      %1163 = vmatpush.msra.mxu0 0.0
      %1164 = vmatpush.msra.mxu0 0.0
      %1165 = vmatpush.msra.mxu0 0.0
      %1166 = vmatpush.msra.mxu0 0.0
      %1167 = vmatpush.msra.mxu0 0.0
      %1168 = vmatpush.msra.mxu0 0.0
      %1169 = vmatpush.msra.mxu0 0.0
      %1170 = vmatpush.msra.mxu0 0.0
      %1171 = vmatpush.msra.mxu0 %v1130
      %1172 = vmatmul.f32.gmra.mxu0 %v1134
      %v1173 = vpop.f32.mrf.mxu0
      %v1174 = vadd.f32 0.0, %v1173
      %1175 = vdwg.mxu0
      %1176 = vmatpush.msra.mxu0 0.0
      %1177 = vmatpush.msra.mxu0 0.0
      %1178 = vmatpush.msra.mxu0 0.0
      %1179 = vmatpush.msra.mxu0 0.0
      %1180 = vmatpush.msra.mxu0 0.0
      %1181 = vmatpush.msra.mxu0 0.0
      %1182 = vmatpush.msra.mxu0 0.0
      %1183 = vmatpush.msra.mxu0 0.0
      %1184 = vmatpush.msra.mxu0 0.0
      %1185 = vmatpush.msra.mxu0 0.0
      %1186 = vmatpush.msra.mxu0 0.0
      %1187 = vmatpush.msra.mxu0 0.0
      %1188 = vmatpush.msra.mxu0 0.0
      %1189 = vmatpush.msra.mxu0 0.0
      %1190 = vmatpush.msra.mxu0 0.0
      %1191 = vmatpush.msra.mxu0 %v1127
      %1192 = vmatmul.f32.gmra.mxu0 %v1134
      %v1193 = vpop.f32.mrf.mxu0
      %v1194 = vadd.f32 0.0, %v1193
      %1195 = vdwg.mxu0
      %v1196 = vadd.f32 %v1117, %v1154
      %v1197 = vadd.f32 %v1118, %v1174
      %v1198 = vadd.f32 %v1119, %v1194
      %1199 = vrot.lane.b32.xlu0 %v736, 80
      %v1200 = vpop.permute.xlu0 %1199
      %1201 = vrot.lane.b32.xlu0 %v737, 92
      %v1202 = vpop.permute.xlu0 %1201
      %1203 = vrot.lane.b32.xlu0 %v738, 92
      %v1204 = vpop.permute.xlu0 %1203
      %1205 = vrot.lane.b32.xlu0 %v739, 92
      %v1206 = vpop.permute.xlu0 %1205
      %vm1207 = vcmask 752640
      %v1208 = vsel %vm1207, %v1202, %v1204
      %v1209 = vsel %vm1207, %v1204, %v1206
      %v1213 = vsel %vm758, %v1200, 0
      %1215 = vmatpush.msra.mxu0 0.0
      %1216 = vmatpush.msra.mxu0 0.0
      %1217 = vmatpush.msra.mxu0 0.0
      %1218 = vmatpush.msra.mxu0 0.0
      %1219 = vmatpush.msra.mxu0 0.0
      %1220 = vmatpush.msra.mxu0 0.0
      %1221 = vmatpush.msra.mxu0 0.0
      %1222 = vmatpush.msra.mxu0 0.0
      %1223 = vmatpush.msra.mxu0 0.0
      %1224 = vmatpush.msra.mxu0 0.0
      %1225 = vmatpush.msra.mxu0 0.0
      %1226 = vmatpush.msra.mxu0 0.0
      %1227 = vmatpush.msra.mxu0 0.0
      %1228 = vmatpush.msra.mxu0 0.0
      %1229 = vmatpush.msra.mxu0 0.0
      %1230 = vmatpush.msra.mxu0 %v1208
      %1231 = vmatmul.f32.gmra.mxu0 %v1213
      %v1232 = vpop.f32.mrf.mxu0
      %v1233 = vadd.f32 0.0, %v1232
      %1234 = vdwg.mxu0
      %1235 = vmatpush.msra.mxu0 0.0
      %1236 = vmatpush.msra.mxu0 0.0
      %1237 = vmatpush.msra.mxu0 0.0
      %1238 = vmatpush.msra.mxu0 0.0
      %1239 = vmatpush.msra.mxu0 0.0
      %1240 = vmatpush.msra.mxu0 0.0
      %1241 = vmatpush.msra.mxu0 0.0
      %1242 = vmatpush.msra.mxu0 0.0
      %1243 = vmatpush.msra.mxu0 0.0
      %1244 = vmatpush.msra.mxu0 0.0
      %1245 = vmatpush.msra.mxu0 0.0
      %1246 = vmatpush.msra.mxu0 0.0
      %1247 = vmatpush.msra.mxu0 0.0
      %1248 = vmatpush.msra.mxu0 0.0
      %1249 = vmatpush.msra.mxu0 0.0
      %1250 = vmatpush.msra.mxu0 %v1209
      %1251 = vmatmul.f32.gmra.mxu0 %v1213
      %v1252 = vpop.f32.mrf.mxu0
      %v1253 = vadd.f32 0.0, %v1252
      %1254 = vdwg.mxu0
      %1255 = vmatpush.msra.mxu0 0.0
      %1256 = vmatpush.msra.mxu0 0.0
      %1257 = vmatpush.msra.mxu0 0.0
      %1258 = vmatpush.msra.mxu0 0.0
      %1259 = vmatpush.msra.mxu0 0.0
      %1260 = vmatpush.msra.mxu0 0.0
      %1261 = vmatpush.msra.mxu0 0.0
      %1262 = vmatpush.msra.mxu0 0.0
      %1263 = vmatpush.msra.mxu0 0.0
      %1264 = vmatpush.msra.mxu0 0.0
      %1265 = vmatpush.msra.mxu0 0.0
      %1266 = vmatpush.msra.mxu0 0.0
      %1267 = vmatpush.msra.mxu0 0.0
      %1268 = vmatpush.msra.mxu0 0.0
      %1269 = vmatpush.msra.mxu0 0.0
      %1270 = vmatpush.msra.mxu0 %v1206
      %1271 = vmatmul.f32.gmra.mxu0 %v1213
      %v1272 = vpop.f32.mrf.mxu0
      %v1273 = vadd.f32 0.0, %v1272
      %1274 = vdwg.mxu0
      %v1275 = vadd.f32 %v1196, %v1233
      %v1276 = vadd.f32 %v1197, %v1253
      %v1277 = vadd.f32 %v1198, %v1273
      %1278 = vrot.lane.b32.xlu0 %v736, 72
      %v1279 = vpop.permute.xlu0 %1278
      %1280 = vrot.lane.b32.xlu0 %v737, 91
      %v1281 = vpop.permute.xlu0 %1280
      %1282 = vrot.lane.b32.xlu0 %v738, 91
      %v1283 = vpop.permute.xlu0 %1282
      %1284 = vrot.lane.b32.xlu0 %v739, 91
      %v1285 = vpop.permute.xlu0 %1284
      %vm1286 = vcmask 744448
      %v1287 = vsel %vm1286, %v1281, %v1283
      %v1288 = vsel %vm1286, %v1283, %v1285
      %v1292 = vsel %vm758, %v1279, 0
      %1294 = vmatpush.msra.mxu0 0.0
      %1295 = vmatpush.msra.mxu0 0.0
      %1296 = vmatpush.msra.mxu0 0.0
      %1297 = vmatpush.msra.mxu0 0.0
      %1298 = vmatpush.msra.mxu0 0.0
      %1299 = vmatpush.msra.mxu0 0.0
      %1300 = vmatpush.msra.mxu0 0.0
      %1301 = vmatpush.msra.mxu0 0.0
      %1302 = vmatpush.msra.mxu0 0.0
      %1303 = vmatpush.msra.mxu0 0.0
      %1304 = vmatpush.msra.mxu0 0.0
      %1305 = vmatpush.msra.mxu0 0.0
      %1306 = vmatpush.msra.mxu0 0.0
      %1307 = vmatpush.msra.mxu0 0.0
      %1308 = vmatpush.msra.mxu0 0.0
      %1309 = vmatpush.msra.mxu0 %v1287
      %1310 = vmatmul.f32.gmra.mxu0 %v1292
      %v1311 = vpop.f32.mrf.mxu0
      %v1312 = vadd.f32 0.0, %v1311
      %1313 = vdwg.mxu0
      %1314 = vmatpush.msra.mxu0 0.0
      %1315 = vmatpush.msra.mxu0 0.0
      %1316 = vmatpush.msra.mxu0 0.0
      %1317 = vmatpush.msra.mxu0 0.0
      %1318 = vmatpush.msra.mxu0 0.0
      %1319 = vmatpush.msra.mxu0 0.0
      %1320 = vmatpush.msra.mxu0 0.0
      %1321 = vmatpush.msra.mxu0 0.0
      %1322 = vmatpush.msra.mxu0 0.0
      %1323 = vmatpush.msra.mxu0 0.0
      %1324 = vmatpush.msra.mxu0 0.0
      %1325 = vmatpush.msra.mxu0 0.0
      %1326 = vmatpush.msra.mxu0 0.0
      %1327 = vmatpush.msra.mxu0 0.0
      %1328 = vmatpush.msra.mxu0 0.0
      %1329 = vmatpush.msra.mxu0 %v1288
      %1330 = vmatmul.f32.gmra.mxu0 %v1292
      %v1331 = vpop.f32.mrf.mxu0
      %v1332 = vadd.f32 0.0, %v1331
      %1333 = vdwg.mxu0
      %1334 = vmatpush.msra.mxu0 0.0
      %1335 = vmatpush.msra.mxu0 0.0
      %1336 = vmatpush.msra.mxu0 0.0
      %1337 = vmatpush.msra.mxu0 0.0
      %1338 = vmatpush.msra.mxu0 0.0
      %1339 = vmatpush.msra.mxu0 0.0
      %1340 = vmatpush.msra.mxu0 0.0
      %1341 = vmatpush.msra.mxu0 0.0
      %1342 = vmatpush.msra.mxu0 0.0
      %1343 = vmatpush.msra.mxu0 0.0
      %1344 = vmatpush.msra.mxu0 0.0
      %1345 = vmatpush.msra.mxu0 0.0
      %1346 = vmatpush.msra.mxu0 0.0
      %1347 = vmatpush.msra.mxu0 0.0
      %1348 = vmatpush.msra.mxu0 0.0
      %1349 = vmatpush.msra.mxu0 %v1285
      %1350 = vmatmul.f32.gmra.mxu0 %v1292
      %v1351 = vpop.f32.mrf.mxu0
      %v1352 = vadd.f32 0.0, %v1351
      %1353 = vdwg.mxu0
      %v1354 = vadd.f32 %v1275, %v1312
      %v1355 = vadd.f32 %v1276, %v1332
      %v1356 = vadd.f32 %v1277, %v1352
      %1357 = vrot.lane.b32.xlu0 %v736, 64
      %v1358 = vpop.permute.xlu0 %1357
      %1359 = vrot.lane.b32.xlu0 %v737, 90
      %v1360 = vpop.permute.xlu0 %1359
      %1361 = vrot.lane.b32.xlu0 %v738, 90
      %v1362 = vpop.permute.xlu0 %1361
      %1363 = vrot.lane.b32.xlu0 %v739, 90
      %v1364 = vpop.permute.xlu0 %1363
      %vm1365 = vcmask 736256
      %v1366 = vsel %vm1365, %v1360, %v1362
      %v1367 = vsel %vm1365, %v1362, %v1364
      %v1371 = vsel %vm758, %v1358, 0
      %1373 = vmatpush.msra.mxu0 0.0
      %1374 = vmatpush.msra.mxu0 0.0
      %1375 = vmatpush.msra.mxu0 0.0
      %1376 = vmatpush.msra.mxu0 0.0
      %1377 = vmatpush.msra.mxu0 0.0
      %1378 = vmatpush.msra.mxu0 0.0
      %1379 = vmatpush.msra.mxu0 0.0
      %1380 = vmatpush.msra.mxu0 0.0
      %1381 = vmatpush.msra.mxu0 0.0
      %1382 = vmatpush.msra.mxu0 0.0
      %1383 = vmatpush.msra.mxu0 0.0
      %1384 = vmatpush.msra.mxu0 0.0
      %1385 = vmatpush.msra.mxu0 0.0
      %1386 = vmatpush.msra.mxu0 0.0
      %1387 = vmatpush.msra.mxu0 0.0
      %1388 = vmatpush.msra.mxu0 %v1366
      %1389 = vmatmul.f32.gmra.mxu0 %v1371
      %v1390 = vpop.f32.mrf.mxu0
      %v1391 = vadd.f32 0.0, %v1390
      %1392 = vdwg.mxu0
      %1393 = vmatpush.msra.mxu0 0.0
      %1394 = vmatpush.msra.mxu0 0.0
      %1395 = vmatpush.msra.mxu0 0.0
      %1396 = vmatpush.msra.mxu0 0.0
      %1397 = vmatpush.msra.mxu0 0.0
      %1398 = vmatpush.msra.mxu0 0.0
      %1399 = vmatpush.msra.mxu0 0.0
      %1400 = vmatpush.msra.mxu0 0.0
      %1401 = vmatpush.msra.mxu0 0.0
      %1402 = vmatpush.msra.mxu0 0.0
      %1403 = vmatpush.msra.mxu0 0.0
      %1404 = vmatpush.msra.mxu0 0.0
      %1405 = vmatpush.msra.mxu0 0.0
      %1406 = vmatpush.msra.mxu0 0.0
      %1407 = vmatpush.msra.mxu0 0.0
      %1408 = vmatpush.msra.mxu0 %v1367
      %1409 = vmatmul.f32.gmra.mxu0 %v1371
      %v1410 = vpop.f32.mrf.mxu0
      %v1411 = vadd.f32 0.0, %v1410
      %1412 = vdwg.mxu0
      %1413 = vmatpush.msra.mxu0 0.0
      %1414 = vmatpush.msra.mxu0 0.0
      %1415 = vmatpush.msra.mxu0 0.0
      %1416 = vmatpush.msra.mxu0 0.0
      %1417 = vmatpush.msra.mxu0 0.0
      %1418 = vmatpush.msra.mxu0 0.0
      %1419 = vmatpush.msra.mxu0 0.0
      %1420 = vmatpush.msra.mxu0 0.0
      %1421 = vmatpush.msra.mxu0 0.0
      %1422 = vmatpush.msra.mxu0 0.0
      %1423 = vmatpush.msra.mxu0 0.0
      %1424 = vmatpush.msra.mxu0 0.0
      %1425 = vmatpush.msra.mxu0 0.0
      %1426 = vmatpush.msra.mxu0 0.0
      %1427 = vmatpush.msra.mxu0 0.0
      %1428 = vmatpush.msra.mxu0 %v1364
      %1429 = vmatmul.f32.gmra.mxu0 %v1371
      %v1430 = vpop.f32.mrf.mxu0
      %v1431 = vadd.f32 0.0, %v1430
      %1432 = vdwg.mxu0
      %v1433 = vadd.f32 %v1354, %v1391
      %v1434 = vadd.f32 %v1355, %v1411
      %v1435 = vadd.f32 %v1356, %v1431
      %v1436 = vld [vmem:[%s7] sm:$0xff]
      %1438 = vset.pattern.permute.xlu0 0
      %1439 = vperm.xlu0 %1438, %v1436
      %v1440 = vpop.permute.xlu0 %1439
      %v1442 = vadd.f32 %v1433, %v1440
      %v1443 = vadd.f32 %v1434, %v1440
      %v1444 = vadd.f32 %v1435, %v1440
      %v1445 = vld [vmem:[%s5] sm:$0x7]
      %v1447 = vperm.slane %v1445, 0
      %v1448 = vperm.slane %v1445, 1
      %v1449 = vperm.slane %v1445, 2
      %v1453 = vmul.f32 %v1442, %v1447
      %v1454 = vmul.f32 %v1443, %v1448
      %v1455 = vmul.f32 %v1444, %v1449
      %1459 = vrot.lane.b32.xlu0 %v1453, 19
      %v1460 = vpop.permute.xlu0 %1459
      %1461 = vrot.lane.b32.xlu0 %v1454, 19
      %v1462 = vpop.permute.xlu0 %1461
      %1463 = vrot.lane.b32.xlu0 %v1455, 19
      %v1464 = vpop.permute.xlu0 %1463
      %v1465 = vsel %vm377, %v1460, %v1462
      %v1466 = vsel %vm377, %v1462, %v1464
      %vm1470 = vcmask 1047704
      %1471 = vst.msk [vmem:[#allocation3] sm:$0xff] %vm1470, %v1460
      %1472 = vst [vmem:[#allocation3 + $0x8] sm:$0xff] %v1465
      %vm1473 = vcmask 711680
      %1474 = vst.msk [vmem:[#allocation3 + $0x10] sm:$0xff] %vm1473, %v1466
      %v1475 = vld [vmem:[%s8] sm:$0xff]
      %v1476 = vld [vmem:[#allocation3] sm:$0xff]
      %v1477 = vld [vmem:[#allocation3 + $0x8] sm:$0xff]
      %v1478 = vld [vmem:[#allocation3 + $0x10] sm:$0xff]
      %1480 = vrot.lane.b32.xlu0 %v1475, 120
      %v1481 = vpop.permute.xlu0 %1480
      %1485 = vrot.lane.b32.xlu0 %v1476, 127
      %v1486 = vpop.permute.xlu0 %1485
      %1487 = vrot.lane.b32.xlu0 %v1477, 127
      %v1488 = vpop.permute.xlu0 %1487
      %1489 = vrot.lane.b32.xlu0 %v1478, 127
      %v1490 = vpop.permute.xlu0 %1489
      %v1491 = vsel %vm752, %v1486, %v1488
      %v1492 = vsel %vm752, %v1488, %v1490
      %v1496 = vsel %vm758, %v1481, 0
      %1498 = vmatpush.msra.mxu0 0.0
      %1499 = vmatpush.msra.mxu0 0.0
      %1500 = vmatpush.msra.mxu0 0.0
      %1501 = vmatpush.msra.mxu0 0.0
      %1502 = vmatpush.msra.mxu0 0.0
      %1503 = vmatpush.msra.mxu0 0.0
      %1504 = vmatpush.msra.mxu0 0.0
      %1505 = vmatpush.msra.mxu0 0.0
      %1506 = vmatpush.msra.mxu0 0.0
      %1507 = vmatpush.msra.mxu0 0.0
      %1508 = vmatpush.msra.mxu0 0.0
      %1509 = vmatpush.msra.mxu0 0.0
      %1510 = vmatpush.msra.mxu0 0.0
      %1511 = vmatpush.msra.mxu0 0.0
      %1512 = vmatpush.msra.mxu0 0.0
      %1513 = vmatpush.msra.mxu0 %v1491
      %1514 = vmatmul.f32.gmra.mxu0 %v1496
      %v1515 = vpop.f32.mrf.mxu0
      %v1516 = vadd.f32 0.0, %v1515
      %1517 = vdwg.mxu0
      %1518 = vmatpush.msra.mxu0 0.0
      %1519 = vmatpush.msra.mxu0 0.0
      %1520 = vmatpush.msra.mxu0 0.0
      %1521 = vmatpush.msra.mxu0 0.0
      %1522 = vmatpush.msra.mxu0 0.0
      %1523 = vmatpush.msra.mxu0 0.0
      %1524 = vmatpush.msra.mxu0 0.0
      %1525 = vmatpush.msra.mxu0 0.0
      %1526 = vmatpush.msra.mxu0 0.0
      %1527 = vmatpush.msra.mxu0 0.0
      %1528 = vmatpush.msra.mxu0 0.0
      %1529 = vmatpush.msra.mxu0 0.0
      %1530 = vmatpush.msra.mxu0 0.0
      %1531 = vmatpush.msra.mxu0 0.0
      %1532 = vmatpush.msra.mxu0 0.0
      %1533 = vmatpush.msra.mxu0 %v1492
      %1534 = vmatmul.f32.gmra.mxu0 %v1496
      %v1535 = vpop.f32.mrf.mxu0
      %v1536 = vadd.f32 0.0, %v1535
      %1537 = vdwg.mxu0
      %1538 = vmatpush.msra.mxu0 0.0
      %1539 = vmatpush.msra.mxu0 0.0
      %1540 = vmatpush.msra.mxu0 0.0
      %1541 = vmatpush.msra.mxu0 0.0
      %1542 = vmatpush.msra.mxu0 0.0
      %1543 = vmatpush.msra.mxu0 0.0
      %1544 = vmatpush.msra.mxu0 0.0
      %1545 = vmatpush.msra.mxu0 0.0
      %1546 = vmatpush.msra.mxu0 0.0
      %1547 = vmatpush.msra.mxu0 0.0
      %1548 = vmatpush.msra.mxu0 0.0
      %1549 = vmatpush.msra.mxu0 0.0
      %1550 = vmatpush.msra.mxu0 0.0
      %1551 = vmatpush.msra.mxu0 0.0
      %1552 = vmatpush.msra.mxu0 0.0
      %1553 = vmatpush.msra.mxu0 %v1490
      %1554 = vmatmul.f32.gmra.mxu0 %v1496
      %v1555 = vpop.f32.mrf.mxu0
      %v1556 = vadd.f32 0.0, %v1555
      %1557 = vdwg.mxu0
      %v1558 = vsel %vm758, %v1475, 0
      %1560 = vmatpush.msra.mxu0 0.0
      %1561 = vmatpush.msra.mxu0 0.0
      %1562 = vmatpush.msra.mxu0 0.0
      %1563 = vmatpush.msra.mxu0 0.0
      %1564 = vmatpush.msra.mxu0 0.0
      %1565 = vmatpush.msra.mxu0 0.0
      %1566 = vmatpush.msra.mxu0 0.0
      %1567 = vmatpush.msra.mxu0 0.0
      %1568 = vmatpush.msra.mxu0 0.0
      %1569 = vmatpush.msra.mxu0 0.0
      %1570 = vmatpush.msra.mxu0 0.0
      %1571 = vmatpush.msra.mxu0 0.0
      %1572 = vmatpush.msra.mxu0 0.0
      %1573 = vmatpush.msra.mxu0 0.0
      %1574 = vmatpush.msra.mxu0 0.0
      %1575 = vmatpush.msra.mxu0 %v1476
      %1576 = vmatmul.f32.gmra.mxu0 %v1558
      %v1577 = vpop.f32.mrf.mxu0
      %v1578 = vadd.f32 %v1516, %v1577
      %1579 = vdwg.mxu0
      %1580 = vmatpush.msra.mxu0 0.0
      %1581 = vmatpush.msra.mxu0 0.0
      %1582 = vmatpush.msra.mxu0 0.0
      %1583 = vmatpush.msra.mxu0 0.0
      %1584 = vmatpush.msra.mxu0 0.0
      %1585 = vmatpush.msra.mxu0 0.0
      %1586 = vmatpush.msra.mxu0 0.0
      %1587 = vmatpush.msra.mxu0 0.0
      %1588 = vmatpush.msra.mxu0 0.0
      %1589 = vmatpush.msra.mxu0 0.0
      %1590 = vmatpush.msra.mxu0 0.0
      %1591 = vmatpush.msra.mxu0 0.0
      %1592 = vmatpush.msra.mxu0 0.0
      %1593 = vmatpush.msra.mxu0 0.0
      %1594 = vmatpush.msra.mxu0 0.0
      %1595 = vmatpush.msra.mxu0 %v1477
      %1596 = vmatmul.f32.gmra.mxu0 %v1558
      %v1597 = vpop.f32.mrf.mxu0
      %v1598 = vadd.f32 %v1536, %v1597
      %1599 = vdwg.mxu0
      %1600 = vmatpush.msra.mxu0 0.0
      %1601 = vmatpush.msra.mxu0 0.0
      %1602 = vmatpush.msra.mxu0 0.0
      %1603 = vmatpush.msra.mxu0 0.0
      %1604 = vmatpush.msra.mxu0 0.0
      %1605 = vmatpush.msra.mxu0 0.0
      %1606 = vmatpush.msra.mxu0 0.0
      %1607 = vmatpush.msra.mxu0 0.0
      %1608 = vmatpush.msra.mxu0 0.0
      %1609 = vmatpush.msra.mxu0 0.0
      %1610 = vmatpush.msra.mxu0 0.0
      %1611 = vmatpush.msra.mxu0 0.0
      %1612 = vmatpush.msra.mxu0 0.0
      %1613 = vmatpush.msra.mxu0 0.0
      %1614 = vmatpush.msra.mxu0 0.0
      %1615 = vmatpush.msra.mxu0 %v1478
      %1616 = vmatmul.f32.gmra.mxu0 %v1558
      %v1617 = vpop.f32.mrf.mxu0
      %v1618 = vadd.f32 %v1556, %v1617
      %1619 = vdwg.mxu0
      %1620 = vrot.lane.b32.xlu0 %v1475, 112
      %v1621 = vpop.permute.xlu0 %1620
      %1622 = vrot.lane.b32.xlu0 %v1476, 126
      %v1623 = vpop.permute.xlu0 %1622
      %1624 = vrot.lane.b32.xlu0 %v1477, 126
      %v1625 = vpop.permute.xlu0 %1624
      %1626 = vrot.lane.b32.xlu0 %v1478, 126
      %v1627 = vpop.permute.xlu0 %1626
      %v1628 = vsel %vm891, %v1623, %v1625
      %v1629 = vsel %vm891, %v1625, %v1627
      %v1633 = vsel %vm758, %v1621, 0
      %1635 = vmatpush.msra.mxu0 0.0
      %1636 = vmatpush.msra.mxu0 0.0
      %1637 = vmatpush.msra.mxu0 0.0
      %1638 = vmatpush.msra.mxu0 0.0
      %1639 = vmatpush.msra.mxu0 0.0
      %1640 = vmatpush.msra.mxu0 0.0
      %1641 = vmatpush.msra.mxu0 0.0
      %1642 = vmatpush.msra.mxu0 0.0
      %1643 = vmatpush.msra.mxu0 0.0
      %1644 = vmatpush.msra.mxu0 0.0
      %1645 = vmatpush.msra.mxu0 0.0
      %1646 = vmatpush.msra.mxu0 0.0
      %1647 = vmatpush.msra.mxu0 0.0
      %1648 = vmatpush.msra.mxu0 0.0
      %1649 = vmatpush.msra.mxu0 0.0
      %1650 = vmatpush.msra.mxu0 %v1628
      %1651 = vmatmul.f32.gmra.mxu0 %v1633
      %v1652 = vpop.f32.mrf.mxu0
      %v1653 = vadd.f32 0.0, %v1652
      %1654 = vdwg.mxu0
      %1655 = vmatpush.msra.mxu0 0.0
      %1656 = vmatpush.msra.mxu0 0.0
      %1657 = vmatpush.msra.mxu0 0.0
      %1658 = vmatpush.msra.mxu0 0.0
      %1659 = vmatpush.msra.mxu0 0.0
      %1660 = vmatpush.msra.mxu0 0.0
      %1661 = vmatpush.msra.mxu0 0.0
      %1662 = vmatpush.msra.mxu0 0.0
      %1663 = vmatpush.msra.mxu0 0.0
      %1664 = vmatpush.msra.mxu0 0.0
      %1665 = vmatpush.msra.mxu0 0.0
      %1666 = vmatpush.msra.mxu0 0.0
      %1667 = vmatpush.msra.mxu0 0.0
      %1668 = vmatpush.msra.mxu0 0.0
      %1669 = vmatpush.msra.mxu0 0.0
      %1670 = vmatpush.msra.mxu0 %v1629
      %1671 = vmatmul.f32.gmra.mxu0 %v1633
      %v1672 = vpop.f32.mrf.mxu0
      %v1673 = vadd.f32 0.0, %v1672
      %1674 = vdwg.mxu0
      %1675 = vmatpush.msra.mxu0 0.0
      %1676 = vmatpush.msra.mxu0 0.0
      %1677 = vmatpush.msra.mxu0 0.0
      %1678 = vmatpush.msra.mxu0 0.0
      %1679 = vmatpush.msra.mxu0 0.0
      %1680 = vmatpush.msra.mxu0 0.0
      %1681 = vmatpush.msra.mxu0 0.0
      %1682 = vmatpush.msra.mxu0 0.0
      %1683 = vmatpush.msra.mxu0 0.0
      %1684 = vmatpush.msra.mxu0 0.0
      %1685 = vmatpush.msra.mxu0 0.0
      %1686 = vmatpush.msra.mxu0 0.0
      %1687 = vmatpush.msra.mxu0 0.0
      %1688 = vmatpush.msra.mxu0 0.0
      %1689 = vmatpush.msra.mxu0 0.0
      %1690 = vmatpush.msra.mxu0 %v1627
      %1691 = vmatmul.f32.gmra.mxu0 %v1633
      %v1692 = vpop.f32.mrf.mxu0
      %v1693 = vadd.f32 0.0, %v1692
      %1694 = vdwg.mxu0
      %v1695 = vadd.f32 %v1578, %v1653
      %v1696 = vadd.f32 %v1598, %v1673
      %v1697 = vadd.f32 %v1618, %v1693
      %1698 = vrot.lane.b32.xlu0 %v1475, 104
      %v1699 = vpop.permute.xlu0 %1698
      %1700 = vrot.lane.b32.xlu0 %v1476, 110
      %v1701 = vpop.permute.xlu0 %1700
      %1702 = vrot.lane.b32.xlu0 %v1477, 110
      %v1703 = vpop.permute.xlu0 %1702
      %1704 = vrot.lane.b32.xlu0 %v1478, 110
      %v1705 = vpop.permute.xlu0 %1704
      %v1706 = vsel %vm970, %v1701, %v1703
      %v1707 = vsel %vm970, %v1703, %v1705
      %v1711 = vsel %vm758, %v1699, 0
      %1713 = vmatpush.msra.mxu0 0.0
      %1714 = vmatpush.msra.mxu0 0.0
      %1715 = vmatpush.msra.mxu0 0.0
      %1716 = vmatpush.msra.mxu0 0.0
      %1717 = vmatpush.msra.mxu0 0.0
      %1718 = vmatpush.msra.mxu0 0.0
      %1719 = vmatpush.msra.mxu0 0.0
      %1720 = vmatpush.msra.mxu0 0.0
      %1721 = vmatpush.msra.mxu0 0.0
      %1722 = vmatpush.msra.mxu0 0.0
      %1723 = vmatpush.msra.mxu0 0.0
      %1724 = vmatpush.msra.mxu0 0.0
      %1725 = vmatpush.msra.mxu0 0.0
      %1726 = vmatpush.msra.mxu0 0.0
      %1727 = vmatpush.msra.mxu0 0.0
      %1728 = vmatpush.msra.mxu0 %v1706
      %1729 = vmatmul.f32.gmra.mxu0 %v1711
      %v1730 = vpop.f32.mrf.mxu0
      %v1731 = vadd.f32 0.0, %v1730
      %1732 = vdwg.mxu0
      %1733 = vmatpush.msra.mxu0 0.0
      %1734 = vmatpush.msra.mxu0 0.0
      %1735 = vmatpush.msra.mxu0 0.0
      %1736 = vmatpush.msra.mxu0 0.0
      %1737 = vmatpush.msra.mxu0 0.0
      %1738 = vmatpush.msra.mxu0 0.0
      %1739 = vmatpush.msra.mxu0 0.0
      %1740 = vmatpush.msra.mxu0 0.0
      %1741 = vmatpush.msra.mxu0 0.0
      %1742 = vmatpush.msra.mxu0 0.0
      %1743 = vmatpush.msra.mxu0 0.0
      %1744 = vmatpush.msra.mxu0 0.0
      %1745 = vmatpush.msra.mxu0 0.0
      %1746 = vmatpush.msra.mxu0 0.0
      %1747 = vmatpush.msra.mxu0 0.0
      %1748 = vmatpush.msra.mxu0 %v1707
      %1749 = vmatmul.f32.gmra.mxu0 %v1711
      %v1750 = vpop.f32.mrf.mxu0
      %v1751 = vadd.f32 0.0, %v1750
      %1752 = vdwg.mxu0
      %1753 = vmatpush.msra.mxu0 0.0
      %1754 = vmatpush.msra.mxu0 0.0
      %1755 = vmatpush.msra.mxu0 0.0
      %1756 = vmatpush.msra.mxu0 0.0
      %1757 = vmatpush.msra.mxu0 0.0
      %1758 = vmatpush.msra.mxu0 0.0
      %1759 = vmatpush.msra.mxu0 0.0
      %1760 = vmatpush.msra.mxu0 0.0
      %1761 = vmatpush.msra.mxu0 0.0
      %1762 = vmatpush.msra.mxu0 0.0
      %1763 = vmatpush.msra.mxu0 0.0
      %1764 = vmatpush.msra.mxu0 0.0
      %1765 = vmatpush.msra.mxu0 0.0
      %1766 = vmatpush.msra.mxu0 0.0
      %1767 = vmatpush.msra.mxu0 0.0
      %1768 = vmatpush.msra.mxu0 %v1705
      %1769 = vmatmul.f32.gmra.mxu0 %v1711
      %v1770 = vpop.f32.mrf.mxu0
      %v1771 = vadd.f32 0.0, %v1770
      %1772 = vdwg.mxu0
      %v1773 = vadd.f32 %v1695, %v1731
      %v1774 = vadd.f32 %v1696, %v1751
      %v1775 = vadd.f32 %v1697, %v1771
      %1776 = vrot.lane.b32.xlu0 %v1475, 96
      %v1777 = vpop.permute.xlu0 %1776
      %1778 = vrot.lane.b32.xlu0 %v1476, 109
      %v1779 = vpop.permute.xlu0 %1778
      %1780 = vrot.lane.b32.xlu0 %v1477, 109
      %v1781 = vpop.permute.xlu0 %1780
      %1782 = vrot.lane.b32.xlu0 %v1478, 109
      %v1783 = vpop.permute.xlu0 %1782
      %v1784 = vsel %vm1049, %v1779, %v1781
      %v1785 = vsel %vm1049, %v1781, %v1783
      %v1789 = vsel %vm758, %v1777, 0
      %1791 = vmatpush.msra.mxu0 0.0
      %1792 = vmatpush.msra.mxu0 0.0
      %1793 = vmatpush.msra.mxu0 0.0
      %1794 = vmatpush.msra.mxu0 0.0
      %1795 = vmatpush.msra.mxu0 0.0
      %1796 = vmatpush.msra.mxu0 0.0
      %1797 = vmatpush.msra.mxu0 0.0
      %1798 = vmatpush.msra.mxu0 0.0
      %1799 = vmatpush.msra.mxu0 0.0
      %1800 = vmatpush.msra.mxu0 0.0
      %1801 = vmatpush.msra.mxu0 0.0
      %1802 = vmatpush.msra.mxu0 0.0
      %1803 = vmatpush.msra.mxu0 0.0
      %1804 = vmatpush.msra.mxu0 0.0
      %1805 = vmatpush.msra.mxu0 0.0
      %1806 = vmatpush.msra.mxu0 %v1784
      %1807 = vmatmul.f32.gmra.mxu0 %v1789
      %v1808 = vpop.f32.mrf.mxu0
      %v1809 = vadd.f32 0.0, %v1808
      %1810 = vdwg.mxu0
      %1811 = vmatpush.msra.mxu0 0.0
      %1812 = vmatpush.msra.mxu0 0.0
      %1813 = vmatpush.msra.mxu0 0.0
      %1814 = vmatpush.msra.mxu0 0.0
      %1815 = vmatpush.msra.mxu0 0.0
      %1816 = vmatpush.msra.mxu0 0.0
      %1817 = vmatpush.msra.mxu0 0.0
      %1818 = vmatpush.msra.mxu0 0.0
      %1819 = vmatpush.msra.mxu0 0.0
      %1820 = vmatpush.msra.mxu0 0.0
      %1821 = vmatpush.msra.mxu0 0.0
      %1822 = vmatpush.msra.mxu0 0.0
      %1823 = vmatpush.msra.mxu0 0.0
      %1824 = vmatpush.msra.mxu0 0.0
      %1825 = vmatpush.msra.mxu0 0.0
      %1826 = vmatpush.msra.mxu0 %v1785
      %1827 = vmatmul.f32.gmra.mxu0 %v1789
      %v1828 = vpop.f32.mrf.mxu0
      %v1829 = vadd.f32 0.0, %v1828
      %1830 = vdwg.mxu0
      %1831 = vmatpush.msra.mxu0 0.0
      %1832 = vmatpush.msra.mxu0 0.0
      %1833 = vmatpush.msra.mxu0 0.0
      %1834 = vmatpush.msra.mxu0 0.0
      %1835 = vmatpush.msra.mxu0 0.0
      %1836 = vmatpush.msra.mxu0 0.0
      %1837 = vmatpush.msra.mxu0 0.0
      %1838 = vmatpush.msra.mxu0 0.0
      %1839 = vmatpush.msra.mxu0 0.0
      %1840 = vmatpush.msra.mxu0 0.0
      %1841 = vmatpush.msra.mxu0 0.0
      %1842 = vmatpush.msra.mxu0 0.0
      %1843 = vmatpush.msra.mxu0 0.0
      %1844 = vmatpush.msra.mxu0 0.0
      %1845 = vmatpush.msra.mxu0 0.0
      %1846 = vmatpush.msra.mxu0 %v1783
      %1847 = vmatmul.f32.gmra.mxu0 %v1789
      %v1848 = vpop.f32.mrf.mxu0
      %v1849 = vadd.f32 0.0, %v1848
      %1850 = vdwg.mxu0
      %v1851 = vadd.f32 %v1773, %v1809
      %v1852 = vadd.f32 %v1774, %v1829
      %v1853 = vadd.f32 %v1775, %v1849
      %1854 = vrot.lane.b32.xlu0 %v1475, 88
      %v1855 = vpop.permute.xlu0 %1854
      %1856 = vrot.lane.b32.xlu0 %v1476, 108
      %v1857 = vpop.permute.xlu0 %1856
      %1858 = vrot.lane.b32.xlu0 %v1477, 108
      %v1859 = vpop.permute.xlu0 %1858
      %1860 = vrot.lane.b32.xlu0 %v1478, 108
      %v1861 = vpop.permute.xlu0 %1860
      %v1862 = vsel %vm1128, %v1857, %v1859
      %v1863 = vsel %vm1128, %v1859, %v1861
      %v1867 = vsel %vm758, %v1855, 0
      %1869 = vmatpush.msra.mxu0 0.0
      %1870 = vmatpush.msra.mxu0 0.0
      %1871 = vmatpush.msra.mxu0 0.0
      %1872 = vmatpush.msra.mxu0 0.0
      %1873 = vmatpush.msra.mxu0 0.0
      %1874 = vmatpush.msra.mxu0 0.0
      %1875 = vmatpush.msra.mxu0 0.0
      %1876 = vmatpush.msra.mxu0 0.0
      %1877 = vmatpush.msra.mxu0 0.0
      %1878 = vmatpush.msra.mxu0 0.0
      %1879 = vmatpush.msra.mxu0 0.0
      %1880 = vmatpush.msra.mxu0 0.0
      %1881 = vmatpush.msra.mxu0 0.0
      %1882 = vmatpush.msra.mxu0 0.0
      %1883 = vmatpush.msra.mxu0 0.0
      %1884 = vmatpush.msra.mxu0 %v1862
      %1885 = vmatmul.f32.gmra.mxu0 %v1867
      %v1886 = vpop.f32.mrf.mxu0
      %v1887 = vadd.f32 0.0, %v1886
      %1888 = vdwg.mxu0
      %1889 = vmatpush.msra.mxu0 0.0
      %1890 = vmatpush.msra.mxu0 0.0
      %1891 = vmatpush.msra.mxu0 0.0
      %1892 = vmatpush.msra.mxu0 0.0
      %1893 = vmatpush.msra.mxu0 0.0
      %1894 = vmatpush.msra.mxu0 0.0
      %1895 = vmatpush.msra.mxu0 0.0
      %1896 = vmatpush.msra.mxu0 0.0
      %1897 = vmatpush.msra.mxu0 0.0
      %1898 = vmatpush.msra.mxu0 0.0
      %1899 = vmatpush.msra.mxu0 0.0
      %1900 = vmatpush.msra.mxu0 0.0
      %1901 = vmatpush.msra.mxu0 0.0
      %1902 = vmatpush.msra.mxu0 0.0
      %1903 = vmatpush.msra.mxu0 0.0
      %1904 = vmatpush.msra.mxu0 %v1863
      %1905 = vmatmul.f32.gmra.mxu0 %v1867
      %v1906 = vpop.f32.mrf.mxu0
      %v1907 = vadd.f32 0.0, %v1906
      %1908 = vdwg.mxu0
      %1909 = vmatpush.msra.mxu0 0.0
      %1910 = vmatpush.msra.mxu0 0.0
      %1911 = vmatpush.msra.mxu0 0.0
      %1912 = vmatpush.msra.mxu0 0.0
      %1913 = vmatpush.msra.mxu0 0.0
      %1914 = vmatpush.msra.mxu0 0.0
      %1915 = vmatpush.msra.mxu0 0.0
      %1916 = vmatpush.msra.mxu0 0.0
      %1917 = vmatpush.msra.mxu0 0.0
      %1918 = vmatpush.msra.mxu0 0.0
      %1919 = vmatpush.msra.mxu0 0.0
      %1920 = vmatpush.msra.mxu0 0.0
      %1921 = vmatpush.msra.mxu0 0.0
      %1922 = vmatpush.msra.mxu0 0.0
      %1923 = vmatpush.msra.mxu0 0.0
      %1924 = vmatpush.msra.mxu0 %v1861
      %1925 = vmatmul.f32.gmra.mxu0 %v1867
      %v1926 = vpop.f32.mrf.mxu0
      %v1927 = vadd.f32 0.0, %v1926
      %1928 = vdwg.mxu0
      %v1929 = vadd.f32 %v1851, %v1887
      %v1930 = vadd.f32 %v1852, %v1907
      %v1931 = vadd.f32 %v1853, %v1927
      %1932 = vrot.lane.b32.xlu0 %v1475, 80
      %v1933 = vpop.permute.xlu0 %1932
      %1934 = vrot.lane.b32.xlu0 %v1476, 92
      %v1935 = vpop.permute.xlu0 %1934
      %1936 = vrot.lane.b32.xlu0 %v1477, 92
      %v1937 = vpop.permute.xlu0 %1936
      %1938 = vrot.lane.b32.xlu0 %v1478, 92
      %v1939 = vpop.permute.xlu0 %1938
      %v1940 = vsel %vm1207, %v1935, %v1937
      %v1941 = vsel %vm1207, %v1937, %v1939
      %v1945 = vsel %vm758, %v1933, 0
      %1947 = vmatpush.msra.mxu0 0.0
      %1948 = vmatpush.msra.mxu0 0.0
      %1949 = vmatpush.msra.mxu0 0.0
      %1950 = vmatpush.msra.mxu0 0.0
      %1951 = vmatpush.msra.mxu0 0.0
      %1952 = vmatpush.msra.mxu0 0.0
      %1953 = vmatpush.msra.mxu0 0.0
      %1954 = vmatpush.msra.mxu0 0.0
      %1955 = vmatpush.msra.mxu0 0.0
      %1956 = vmatpush.msra.mxu0 0.0
      %1957 = vmatpush.msra.mxu0 0.0
      %1958 = vmatpush.msra.mxu0 0.0
      %1959 = vmatpush.msra.mxu0 0.0
      %1960 = vmatpush.msra.mxu0 0.0
      %1961 = vmatpush.msra.mxu0 0.0
      %1962 = vmatpush.msra.mxu0 %v1940
      %1963 = vmatmul.f32.gmra.mxu0 %v1945
      %v1964 = vpop.f32.mrf.mxu0
      %v1965 = vadd.f32 0.0, %v1964
      %1966 = vdwg.mxu0
      %1967 = vmatpush.msra.mxu0 0.0
      %1968 = vmatpush.msra.mxu0 0.0
      %1969 = vmatpush.msra.mxu0 0.0
      %1970 = vmatpush.msra.mxu0 0.0
      %1971 = vmatpush.msra.mxu0 0.0
      %1972 = vmatpush.msra.mxu0 0.0
      %1973 = vmatpush.msra.mxu0 0.0
      %1974 = vmatpush.msra.mxu0 0.0
      %1975 = vmatpush.msra.mxu0 0.0
      %1976 = vmatpush.msra.mxu0 0.0
      %1977 = vmatpush.msra.mxu0 0.0
      %1978 = vmatpush.msra.mxu0 0.0
      %1979 = vmatpush.msra.mxu0 0.0
      %1980 = vmatpush.msra.mxu0 0.0
      %1981 = vmatpush.msra.mxu0 0.0
      %1982 = vmatpush.msra.mxu0 %v1941
      %1983 = vmatmul.f32.gmra.mxu0 %v1945
      %v1984 = vpop.f32.mrf.mxu0
      %v1985 = vadd.f32 0.0, %v1984
      %1986 = vdwg.mxu0
      %1987 = vmatpush.msra.mxu0 0.0
      %1988 = vmatpush.msra.mxu0 0.0
      %1989 = vmatpush.msra.mxu0 0.0
      %1990 = vmatpush.msra.mxu0 0.0
      %1991 = vmatpush.msra.mxu0 0.0
      %1992 = vmatpush.msra.mxu0 0.0
      %1993 = vmatpush.msra.mxu0 0.0
      %1994 = vmatpush.msra.mxu0 0.0
      %1995 = vmatpush.msra.mxu0 0.0
      %1996 = vmatpush.msra.mxu0 0.0
      %1997 = vmatpush.msra.mxu0 0.0
      %1998 = vmatpush.msra.mxu0 0.0
      %1999 = vmatpush.msra.mxu0 0.0
      %2000 = vmatpush.msra.mxu0 0.0
      %2001 = vmatpush.msra.mxu0 0.0
      %2002 = vmatpush.msra.mxu0 %v1939
      %2003 = vmatmul.f32.gmra.mxu0 %v1945
      %v2004 = vpop.f32.mrf.mxu0
      %v2005 = vadd.f32 0.0, %v2004
      %2006 = vdwg.mxu0
      %v2007 = vadd.f32 %v1929, %v1965
      %v2008 = vadd.f32 %v1930, %v1985
      %v2009 = vadd.f32 %v1931, %v2005
      %2010 = vrot.lane.b32.xlu0 %v1475, 72
      %v2011 = vpop.permute.xlu0 %2010
      %2012 = vrot.lane.b32.xlu0 %v1476, 91
      %v2013 = vpop.permute.xlu0 %2012
      %2014 = vrot.lane.b32.xlu0 %v1477, 91
      %v2015 = vpop.permute.xlu0 %2014
      %2016 = vrot.lane.b32.xlu0 %v1478, 91
      %v2017 = vpop.permute.xlu0 %2016
      %v2018 = vsel %vm1286, %v2013, %v2015
      %v2019 = vsel %vm1286, %v2015, %v2017
      %v2023 = vsel %vm758, %v2011, 0
      %2025 = vmatpush.msra.mxu0 0.0
      %2026 = vmatpush.msra.mxu0 0.0
      %2027 = vmatpush.msra.mxu0 0.0
      %2028 = vmatpush.msra.mxu0 0.0
      %2029 = vmatpush.msra.mxu0 0.0
      %2030 = vmatpush.msra.mxu0 0.0
      %2031 = vmatpush.msra.mxu0 0.0
      %2032 = vmatpush.msra.mxu0 0.0
      %2033 = vmatpush.msra.mxu0 0.0
      %2034 = vmatpush.msra.mxu0 0.0
      %2035 = vmatpush.msra.mxu0 0.0
      %2036 = vmatpush.msra.mxu0 0.0
      %2037 = vmatpush.msra.mxu0 0.0
      %2038 = vmatpush.msra.mxu0 0.0
      %2039 = vmatpush.msra.mxu0 0.0
      %2040 = vmatpush.msra.mxu0 %v2018
      %2041 = vmatmul.f32.gmra.mxu0 %v2023
      %v2042 = vpop.f32.mrf.mxu0
      %v2043 = vadd.f32 0.0, %v2042
      %2044 = vdwg.mxu0
      %2045 = vmatpush.msra.mxu0 0.0
      %2046 = vmatpush.msra.mxu0 0.0
      %2047 = vmatpush.msra.mxu0 0.0
      %2048 = vmatpush.msra.mxu0 0.0
      %2049 = vmatpush.msra.mxu0 0.0
      %2050 = vmatpush.msra.mxu0 0.0
      %2051 = vmatpush.msra.mxu0 0.0
      %2052 = vmatpush.msra.mxu0 0.0
      %2053 = vmatpush.msra.mxu0 0.0
      %2054 = vmatpush.msra.mxu0 0.0
      %2055 = vmatpush.msra.mxu0 0.0
      %2056 = vmatpush.msra.mxu0 0.0
      %2057 = vmatpush.msra.mxu0 0.0
      %2058 = vmatpush.msra.mxu0 0.0
      %2059 = vmatpush.msra.mxu0 0.0
      %2060 = vmatpush.msra.mxu0 %v2019
      %2061 = vmatmul.f32.gmra.mxu0 %v2023
      %v2062 = vpop.f32.mrf.mxu0
      %v2063 = vadd.f32 0.0, %v2062
      %2064 = vdwg.mxu0
      %2065 = vmatpush.msra.mxu0 0.0
      %2066 = vmatpush.msra.mxu0 0.0
      %2067 = vmatpush.msra.mxu0 0.0
      %2068 = vmatpush.msra.mxu0 0.0
      %2069 = vmatpush.msra.mxu0 0.0
      %2070 = vmatpush.msra.mxu0 0.0
      %2071 = vmatpush.msra.mxu0 0.0
      %2072 = vmatpush.msra.mxu0 0.0
      %2073 = vmatpush.msra.mxu0 0.0
      %2074 = vmatpush.msra.mxu0 0.0
      %2075 = vmatpush.msra.mxu0 0.0
      %2076 = vmatpush.msra.mxu0 0.0
      %2077 = vmatpush.msra.mxu0 0.0
      %2078 = vmatpush.msra.mxu0 0.0
      %2079 = vmatpush.msra.mxu0 0.0
      %2080 = vmatpush.msra.mxu0 %v2017
      %2081 = vmatmul.f32.gmra.mxu0 %v2023
      %v2082 = vpop.f32.mrf.mxu0
      %v2083 = vadd.f32 0.0, %v2082
      %2084 = vdwg.mxu0
      %v2085 = vadd.f32 %v2007, %v2043
      %v2086 = vadd.f32 %v2008, %v2063
      %v2087 = vadd.f32 %v2009, %v2083
      %2088 = vrot.lane.b32.xlu0 %v1475, 64
      %v2089 = vpop.permute.xlu0 %2088
      %2090 = vrot.lane.b32.xlu0 %v1476, 90
      %v2091 = vpop.permute.xlu0 %2090
      %2092 = vrot.lane.b32.xlu0 %v1477, 90
      %v2093 = vpop.permute.xlu0 %2092
      %2094 = vrot.lane.b32.xlu0 %v1478, 90
      %v2095 = vpop.permute.xlu0 %2094
      %v2096 = vsel %vm1365, %v2091, %v2093
      %v2097 = vsel %vm1365, %v2093, %v2095
      %v2101 = vsel %vm758, %v2089, 0
      %2103 = vmatpush.msra.mxu0 0.0
      %2104 = vmatpush.msra.mxu0 0.0
      %2105 = vmatpush.msra.mxu0 0.0
      %2106 = vmatpush.msra.mxu0 0.0
      %2107 = vmatpush.msra.mxu0 0.0
      %2108 = vmatpush.msra.mxu0 0.0
      %2109 = vmatpush.msra.mxu0 0.0
      %2110 = vmatpush.msra.mxu0 0.0
      %2111 = vmatpush.msra.mxu0 0.0
      %2112 = vmatpush.msra.mxu0 0.0
      %2113 = vmatpush.msra.mxu0 0.0
      %2114 = vmatpush.msra.mxu0 0.0
      %2115 = vmatpush.msra.mxu0 0.0
      %2116 = vmatpush.msra.mxu0 0.0
      %2117 = vmatpush.msra.mxu0 0.0
      %2118 = vmatpush.msra.mxu0 %v2096
      %2119 = vmatmul.f32.gmra.mxu0 %v2101
      %v2120 = vpop.f32.mrf.mxu0
      %v2121 = vadd.f32 0.0, %v2120
      %2122 = vdwg.mxu0
      %2123 = vmatpush.msra.mxu0 0.0
      %2124 = vmatpush.msra.mxu0 0.0
      %2125 = vmatpush.msra.mxu0 0.0
      %2126 = vmatpush.msra.mxu0 0.0
      %2127 = vmatpush.msra.mxu0 0.0
      %2128 = vmatpush.msra.mxu0 0.0
      %2129 = vmatpush.msra.mxu0 0.0
      %2130 = vmatpush.msra.mxu0 0.0
      %2131 = vmatpush.msra.mxu0 0.0
      %2132 = vmatpush.msra.mxu0 0.0
      %2133 = vmatpush.msra.mxu0 0.0
      %2134 = vmatpush.msra.mxu0 0.0
      %2135 = vmatpush.msra.mxu0 0.0
      %2136 = vmatpush.msra.mxu0 0.0
      %2137 = vmatpush.msra.mxu0 0.0
      %2138 = vmatpush.msra.mxu0 %v2097
      %2139 = vmatmul.f32.gmra.mxu0 %v2101
      %v2140 = vpop.f32.mrf.mxu0
      %v2141 = vadd.f32 0.0, %v2140
      %2142 = vdwg.mxu0
      %2143 = vmatpush.msra.mxu0 0.0
      %2144 = vmatpush.msra.mxu0 0.0
      %2145 = vmatpush.msra.mxu0 0.0
      %2146 = vmatpush.msra.mxu0 0.0
      %2147 = vmatpush.msra.mxu0 0.0
      %2148 = vmatpush.msra.mxu0 0.0
      %2149 = vmatpush.msra.mxu0 0.0
      %2150 = vmatpush.msra.mxu0 0.0
      %2151 = vmatpush.msra.mxu0 0.0
      %2152 = vmatpush.msra.mxu0 0.0
      %2153 = vmatpush.msra.mxu0 0.0
      %2154 = vmatpush.msra.mxu0 0.0
      %2155 = vmatpush.msra.mxu0 0.0
      %2156 = vmatpush.msra.mxu0 0.0
      %2157 = vmatpush.msra.mxu0 0.0
      %2158 = vmatpush.msra.mxu0 %v2095
      %2159 = vmatmul.f32.gmra.mxu0 %v2101
      %v2160 = vpop.f32.mrf.mxu0
      %v2161 = vadd.f32 0.0, %v2160
      %2162 = vdwg.mxu0
      %v2163 = vadd.f32 %v2085, %v2121
      %v2164 = vadd.f32 %v2086, %v2141
      %v2165 = vadd.f32 %v2087, %v2161
      %v2166 = vld [vmem:[%s3] sm:$0xff]
      %v2167 = vld [vmem:[%s3 + $0x8] sm:$0xff]
      %v2168 = vld [vmem:[%s3 + $0x10] sm:$0xff]
      %v2169 = vld [vmem:[%s3 + $0x18] sm:$0xff]
      %v2170 = vld [vmem:[%s3 + $0x20] sm:$0xff]
      %v2171 = vld [vmem:[%s3 + $0x28] sm:$0xff]
      %v2172 = vld [vmem:[%s3 + $0x30] sm:$0xff]
      %v2173 = vld [vmem:[%s3 + $0x38] sm:$0xff]
      %v2174 = vld [vmem:[%s3 + $0x40] sm:$0xff]
      %v2175 = vld [vmem:[%s3 + $0x48] sm:$0xff]
      %v2176 = vld [vmem:[%s3 + $0x50] sm:$0xff]
      %v2177 = vld [vmem:[%s3 + $0x58] sm:$0xff]
      %v2178 = vld [vmem:[%s3 + $0x60] sm:$0xff]
      %v2179 = vld [vmem:[%s3 + $0x68] sm:$0xff]
      %v2180 = vld [vmem:[%s3 + $0x70] sm:$0xff]
      %v2181 = vld [vmem:[%s3 + $0x78] sm:$0xff]
      %v2182 = vld [vmem:[%s3 + $0x80] sm:$0xff]
      %v2183 = vld [vmem:[%s3 + $0x88] sm:$0xff]
      %v2184 = vld [vmem:[%s3 + $0x90] sm:$0xff]
      %v2185 = vld [vmem:[%s3 + $0x98] sm:$0xff]
      %v2186 = vld [vmem:[%s3 + $0xa0] sm:$0xff]
      %v2187 = vld [vmem:[%s3 + $0xa8] sm:$0xff]
      %v2188 = vld [vmem:[%s3 + $0xb0] sm:$0xff]
      %v2189 = vld [vmem:[%s3 + $0xb8] sm:$0xff]
      %v2190 = vld [vmem:[%s3 + $0xc0] sm:$0xff]
      %v2191 = vld [vmem:[%s3 + $0xc8] sm:$0xff]
      %v2192 = vld [vmem:[%s3 + $0xd0] sm:$0xff]
      %v2193 = vld [vmem:[%s3 + $0xd8] sm:$0xff]
      %v2194 = vld [vmem:[%s3 + $0xe0] sm:$0xff]
      %v2195 = vld [vmem:[%s3 + $0xe8] sm:$0xff]
      %v2196 = vld [vmem:[%s3 + $0xf0] sm:$0xff]
      %v2197 = vld [vmem:[%s3 + $0xf8] sm:$0xff]
      %v2198 = vld [vmem:[%s3 + $0x100] sm:$0xff]
      %v2199 = vld [vmem:[%s3 + $0x108] sm:$0xff]
      %v2200 = vld [vmem:[%s3 + $0x110] sm:$0xff]
      %v2201 = vld [vmem:[%s3 + $0x118] sm:$0xff]
      %v2202 = vld [vmem:[%s3 + $0x120] sm:$0xff]
      %v2203 = vld [vmem:[%s3 + $0x128] sm:$0xff]
      %v2204 = vld [vmem:[%s3 + $0x130] sm:$0xff]
      %v2205 = vld [vmem:[%s3 + $0x138] sm:$0xff]
      %v2206 = vld [vmem:[%s3 + $0x140] sm:$0xff]
      %v2207 = vld [vmem:[%s3 + $0x148] sm:$0xff]
      %v2208 = vld [vmem:[%s3 + $0x150] sm:$0xff]
      %v2209 = vld [vmem:[%s3 + $0x158] sm:$0xff]
      %v2210 = vld [vmem:[%s3 + $0x160] sm:$0xff]
      %v2211 = vld [vmem:[%s3 + $0x168] sm:$0xff]
      %v2212 = vld [vmem:[%s3 + $0x170] sm:$0xff]
      %v2213 = vld [vmem:[%s3 + $0x178] sm:$0xff]
      %v2214 = vld [vmem:[%s3 + $0x180] sm:$0xff]
      %v2215 = vld [vmem:[%s3 + $0x188] sm:$0xff]
      %v2216 = vld [vmem:[%s3 + $0x190] sm:$0xff]
      %v2217 = vld [vmem:[%s3 + $0x198] sm:$0xff]
      %v2218 = vld [vmem:[%s3 + $0x1a0] sm:$0xff]
      %v2219 = vld [vmem:[%s3 + $0x1a8] sm:$0xff]
      %v2220 = vld [vmem:[%s3 + $0x1b0] sm:$0xff]
      %v2221 = vld [vmem:[%s3 + $0x1b8] sm:$0xff]
      %v2222 = vld [vmem:[%s3 + $0x1c0] sm:$0xff]
      %v2223 = vld [vmem:[%s3 + $0x1c8] sm:$0xff]
      %v2224 = vld [vmem:[%s3 + $0x1d0] sm:$0xff]
      %v2225 = vld [vmem:[%s3 + $0x1d8] sm:$0xff]
      %v2226 = vld [vmem:[%s3 + $0x1e0] sm:$0xff]
      %v2227 = vld [vmem:[%s3 + $0x1e8] sm:$0xff]
      %v2228 = vld [vmem:[%s3 + $0x1f0] sm:$0xff]
      %v2229 = vld [vmem:[%s3 + $0x1f8] sm:$0xff]
      %v2230 = vld [vmem:[%s3 + $0x200] sm:$0xff]
      %v2231 = vld [vmem:[%s3 + $0x208] sm:$0xff]
      %v2232 = vld [vmem:[%s3 + $0x210] sm:$0xff]
      %v2233 = vld [vmem:[%s3 + $0x218] sm:$0xff]
      %v2234 = vld [vmem:[%s3 + $0x220] sm:$0xff]
      %v2235 = vld [vmem:[%s3 + $0x228] sm:$0xff]
      %v2236 = vld [vmem:[%s3 + $0x230] sm:$0xff]
      %v2237 = vld [vmem:[%s3 + $0x238] sm:$0xff]
      %v2238 = vld [vmem:[%s3 + $0x240] sm:$0xff]
      %v2239 = vld [vmem:[%s3 + $0x248] sm:$0xff]
      %v2240 = vld [vmem:[%s3 + $0x250] sm:$0xff]
      %v2241 = vld [vmem:[%s3 + $0x258] sm:$0xff]
      %v2242 = vld [vmem:[%s3 + $0x260] sm:$0xff]
      %v2243 = vld [vmem:[%s3 + $0x268] sm:$0xff]
      %v2244 = vld [vmem:[%s3 + $0x270] sm:$0xff]
      %v2245 = vld [vmem:[%s3 + $0x278] sm:$0xff]
      %v2246 = vld [vmem:[%s3 + $0x280] sm:$0xf]
      %v2247 = vld [vmem:[%s3 + $0x288] sm:$0xf]
      %v2248 = vld [vmem:[%s9] sm:$0xff]
      %2250 = vset.pattern.permute.xlu0 0
      %2251 = vperm.xlu0 %2250, %v2248
      %v2252 = vpop.permute.xlu0 %2251
      %vm2254 = vcmask 556032
      %v2256 = vsel %vm2254, %v2165, 0
      %vm2258 = vcmask 1043456
      %v2260 = vsel %vm2258, %v2246, 0
      %v2263 = vsel %vm2258, %v2247, 0
      %2265 = vmatpush.msra.mxu0 %v2196
      %2266 = vmatpush.msra.mxu0 %v2194
      %2267 = vmatpush.msra.mxu0 %v2192
      %2268 = vmatpush.msra.mxu0 %v2190
      %2269 = vmatpush.msra.mxu0 %v2188
      %2270 = vmatpush.msra.mxu0 %v2186
      %2271 = vmatpush.msra.mxu0 %v2184
      %2272 = vmatpush.msra.mxu0 %v2182
      %2273 = vmatpush.msra.mxu0 %v2180
      %2274 = vmatpush.msra.mxu0 %v2178
      %2275 = vmatpush.msra.mxu0 %v2176
      %2276 = vmatpush.msra.mxu0 %v2174
      %2277 = vmatpush.msra.mxu0 %v2172
      %2278 = vmatpush.msra.mxu0 %v2170
      %2279 = vmatpush.msra.mxu0 %v2168
      %2280 = vmatpush.msra.mxu0 %v2166
      %2281 = vmatmul.f32.gmra.mxu0 %v2163
      %v2282 = vpop.f32.mrf.mxu0
      %v2283 = vadd.f32 %v2252, %v2282
      %2284 = vdwg.mxu0
      %2285 = vmatpush.msra.mxu0 %v2228
      %2286 = vmatpush.msra.mxu0 %v2226
      %2287 = vmatpush.msra.mxu0 %v2224
      %2288 = vmatpush.msra.mxu0 %v2222
      %2289 = vmatpush.msra.mxu0 %v2220
      %2290 = vmatpush.msra.mxu0 %v2218
      %2291 = vmatpush.msra.mxu0 %v2216
      %2292 = vmatpush.msra.mxu0 %v2214
      %2293 = vmatpush.msra.mxu0 %v2212
      %2294 = vmatpush.msra.mxu0 %v2210
      %2295 = vmatpush.msra.mxu0 %v2208
      %2296 = vmatpush.msra.mxu0 %v2206
      %2297 = vmatpush.msra.mxu0 %v2204
      %2298 = vmatpush.msra.mxu0 %v2202
      %2299 = vmatpush.msra.mxu0 %v2200
      %2300 = vmatpush.msra.mxu0 %v2198
      %2301 = vmatmul.f32.gmra.mxu0 %v2164
      %v2302 = vpop.f32.mrf.mxu0
      %v2303 = vadd.f32 %v2283, %v2302
      %2304 = vdwg.mxu0
      %2305 = vmatpush.msra.mxu0 0.0
      %2306 = vmatpush.msra.mxu0 0.0
      %2307 = vmatpush.msra.mxu0 0.0
      %2308 = vmatpush.msra.mxu0 0.0
      %2309 = vmatpush.msra.mxu0 0.0
      %2310 = vmatpush.msra.mxu0 0.0
      %2311 = vmatpush.msra.mxu0 0.0
      %2312 = vmatpush.msra.mxu0 %v2260
      %2313 = vmatpush.msra.mxu0 %v2244
      %2314 = vmatpush.msra.mxu0 %v2242
      %2315 = vmatpush.msra.mxu0 %v2240
      %2316 = vmatpush.msra.mxu0 %v2238
      %2317 = vmatpush.msra.mxu0 %v2236
      %2318 = vmatpush.msra.mxu0 %v2234
      %2319 = vmatpush.msra.mxu0 %v2232
      %2320 = vmatpush.msra.mxu0 %v2230
      %2321 = vmatmul.f32.gmra.mxu0 %v2256
      %v2322 = vpop.f32.mrf.mxu0
      %v2323 = vadd.f32 %v2303, %v2322
      %2324 = vdwg.mxu0
      %2325 = vmatpush.msra.mxu0 %v2197
      %2326 = vmatpush.msra.mxu0 %v2195
      %2327 = vmatpush.msra.mxu0 %v2193
      %2328 = vmatpush.msra.mxu0 %v2191
      %2329 = vmatpush.msra.mxu0 %v2189
      %2330 = vmatpush.msra.mxu0 %v2187
      %2331 = vmatpush.msra.mxu0 %v2185
      %2332 = vmatpush.msra.mxu0 %v2183
      %2333 = vmatpush.msra.mxu0 %v2181
      %2334 = vmatpush.msra.mxu0 %v2179
      %2335 = vmatpush.msra.mxu0 %v2177
      %2336 = vmatpush.msra.mxu0 %v2175
      %2337 = vmatpush.msra.mxu0 %v2173
      %2338 = vmatpush.msra.mxu0 %v2171
      %2339 = vmatpush.msra.mxu0 %v2169
      %2340 = vmatpush.msra.mxu0 %v2167
      %2341 = vmatmul.f32.gmra.mxu0 %v2163
      %v2342 = vpop.f32.mrf.mxu0
      %v2343 = vadd.f32 %v2252, %v2342
      %2344 = vdwg.mxu0
      %2345 = vmatpush.msra.mxu0 %v2229
      %2346 = vmatpush.msra.mxu0 %v2227
      %2347 = vmatpush.msra.mxu0 %v2225
      %2348 = vmatpush.msra.mxu0 %v2223
      %2349 = vmatpush.msra.mxu0 %v2221
      %2350 = vmatpush.msra.mxu0 %v2219
      %2351 = vmatpush.msra.mxu0 %v2217
      %2352 = vmatpush.msra.mxu0 %v2215
      %2353 = vmatpush.msra.mxu0 %v2213
      %2354 = vmatpush.msra.mxu0 %v2211
      %2355 = vmatpush.msra.mxu0 %v2209
      %2356 = vmatpush.msra.mxu0 %v2207
      %2357 = vmatpush.msra.mxu0 %v2205
      %2358 = vmatpush.msra.mxu0 %v2203
      %2359 = vmatpush.msra.mxu0 %v2201
      %2360 = vmatpush.msra.mxu0 %v2199
      %2361 = vmatmul.f32.gmra.mxu0 %v2164
      %v2362 = vpop.f32.mrf.mxu0
      %v2363 = vadd.f32 %v2343, %v2362
      %2364 = vdwg.mxu0
      %2365 = vmatpush.msra.mxu0 0.0
      %2366 = vmatpush.msra.mxu0 0.0
      %2367 = vmatpush.msra.mxu0 0.0
      %2368 = vmatpush.msra.mxu0 0.0
      %2369 = vmatpush.msra.mxu0 0.0
      %2370 = vmatpush.msra.mxu0 0.0
      %2371 = vmatpush.msra.mxu0 0.0
      %2372 = vmatpush.msra.mxu0 %v2263
      %2373 = vmatpush.msra.mxu0 %v2245
      %2374 = vmatpush.msra.mxu0 %v2243
      %2375 = vmatpush.msra.mxu0 %v2241
      %2376 = vmatpush.msra.mxu0 %v2239
      %2377 = vmatpush.msra.mxu0 %v2237
      %2378 = vmatpush.msra.mxu0 %v2235
      %2379 = vmatpush.msra.mxu0 %v2233
      %2380 = vmatpush.msra.mxu0 %v2231
      %2381 = vmatmul.f32.gmra.mxu0 %v2256
      %v2382 = vpop.f32.mrf.mxu0
      %v2383 = vadd.f32 %v2363, %v2382
      %2384 = vdwg.mxu0
      %2385 = vst [vmem:[%s376] sm:$0xff] %v2323
      %2386 = vst [vmem:[%s376 + $0x8] sm:$0xff] %v2383
      %p2387 = scmp.lt.s32.totalorder %s21, 1
      %s2388 = scalar_select %p2387, %s21, 1
      %s2389 = smul.addr %s2388, 2
      %s2390 = smul.addr %s2389, 8
      %s2391 = scalar_lea.vmem %s10, %s2390
      // Predicated region
      $region61: #{upadd_forward.1} parent=59 // pred_check
        %p2392 = pneg %p259
      $region62: #{upadd_forward.1} parent=59 // pred_check_branch
        %2394 = sbr.rel (%p2392) target = $region64
      $region63: #{upadd_forward.1} parent=59 // pred_region
        _
      $region64: #{upadd_forward.1} parent=59 // pred_fallthru
        _
    $region60: #{upadd_forward.1} parent=5 // pred_fallthru
      _
    %p2395 = scmp.le.s32.totalorder 2, %s16
    // Predicated region
    $region65: #{upadd_forward.1} parent=5 // pred_check
      %p2396 = pneg %p2395
    $region66: #{upadd_forward.1} parent=5 // pred_check_branch
      %2398 = sbr.rel (%p2396) target = $region68
    $region67: #{upadd_forward.1} parent=5 // pred_region
      %s2399 = ssub.s32 %s16, 2
      // Predicated region
      $region69: #{upadd_forward.1} parent=67 // pred_check
        %p2400 = pneg %p265
      $region70: #{upadd_forward.1} parent=67 // pred_check_branch
        %2402 = sbr.rel (%p2400) target = $region72
      $region71: #{upadd_forward.1} parent=67 // pred_region
        %p2403 = scmp.lt.s32.totalorder %s22, 1
        %s2404 = scalar_select %p2403, %s22, 1
        %s2405 = smul.addr %s2404, 2
        %s2406 = smul.addr %s2405, 8
        %s2407 = scalar_lea.vmem %s10, %s2406
      $region72: #{upadd_forward.1} parent=67 // pred_fallthru
        _
    $region68: #{upadd_forward.1} parent=5 // pred_fallthru
      _
  $region6: #{upadd_forward.1} parent=0 // loop_footer
    %s20 = sadd.s32 1, %s16
  $region7: #{upadd_forward.1} parent=0 // loop_footer_branch
    %15 = sbr.rel target = $region3
  $region8: #{upadd_forward.1} parent=0 // loop_exit
    _

</llo_original>
